<compile_context>
chip_gen: v7x
topology: tpu7x:2x2x1
jax: 0.10.0
libtpu: 0.0.40
codegen_flags: <defaults>
</compile_context>

<pallas_src>
import numpy as np
import jax
import jax.numpy as jnp
from jax.experimental import pallas as pl
from jax.experimental.pallas import tpu as pltpu


SLOPE = 0.01  # LeakyReLU negative slope


# --------------------------- fused Pallas kernel -----------------------------

def _decoder_kernel(x_ref, w1_ref, b1_ref, wc_ref, bc_ref, w2_ref, b2_ref, o_ref):
    # Fused: Linear1 -> LeakyReLU -> (folded ConvTranspose2d) -> LeakyReLU -> Linear2.
    # All operands and intermediates live in VMEM; MXU matmuls run in bf16, f32 acc.
    x = x_ref[...].astype(w1_ref.dtype)
    h = jnp.dot(x, w1_ref[...], preferred_element_type=jnp.float32) + b1_ref[...]
    h = jnp.maximum(h, SLOPE * h)          # LeakyReLU (slope in (0,1)) -> single vmax

    y = jnp.dot(h.astype(wc_ref.dtype), wc_ref[...],
                preferred_element_type=jnp.float32) + bc_ref[...]
    y = jnp.maximum(y, SLOPE * y)

    out = jnp.dot(y.astype(w2_ref.dtype), w2_ref[...],
                  preferred_element_type=jnp.float32) + b2_ref[...]
    o_ref[...] = out.astype(o_ref.dtype)


def decoder_forward(x, prepared, *, block_b=256):
    """Fused decoder forward: one pallas_call, batch-tiled grid, weights resident."""
    w1, b1, wc, bc_row, w2, b2 = prepared
    B, latent = x.shape
    n_h1 = w1.shape[1]         # 16*D*D
    n_h2 = wc.shape[1]         # C*D*D
    n_out = w2.shape[1]        # 2*C*D*D

    # Batch tile: multiple of 8 sublanes, at most block_b; pad B up to a multiple of it.
    tb = min(block_b, ((B + 7) // 8) * 8)
    tb = ((tb + 7) // 8) * 8
    b_pad = ((B + tb - 1) // tb) * tb
    if b_pad != B:
        x = jnp.pad(x, ((0, b_pad - B), (0, 0)))
    grid = (b_pad // tb,)

    flops = 2 * b_pad * (latent * n_h1 + n_h1 * n_h2 + n_h2 * n_out)
    weight_bytes = sum(int(a.size) * a.dtype.itemsize for a in prepared)
    bytes_accessed = (int(x.size) * x.dtype.itemsize + weight_bytes + b_pad * n_out * 4)

    const2 = lambda i: (0, 0)   # weights/biases: same block every grid step -> resident
    out = pl.pallas_call(
        _decoder_kernel,
        out_shape=jax.ShapeDtypeStruct((b_pad, n_out), jnp.float32),
        grid=grid,
        in_specs=[
            pl.BlockSpec((tb, latent), lambda i: (i, 0)),   # streamed activations
            pl.BlockSpec(w1.shape, const2),
            pl.BlockSpec(b1.shape, const2),
            pl.BlockSpec(wc.shape, const2),
            pl.BlockSpec(bc_row.shape, const2),
            pl.BlockSpec(w2.shape, const2),
            pl.BlockSpec(b2.shape, const2),
        ],
        out_specs=pl.BlockSpec((tb, n_out), lambda i: (i, 0)),
        compiler_params=pltpu.CompilerParams(
            dimension_semantics=("parallel",)),             # megacore-shard batch (v7x)
        cost_estimate=pl.CostEstimate(
            flops=flops, transcendentals=0, bytes_accessed=bytes_accessed),
    )(x, w1, b1, wc, bc_row, w2, b2)
    return out[:B]


# --------------------------- one-time parameter preparation ------------------

def prepare_params(W1, b1, Wt, bc, W2, b2, *, D, C, K=5, weight_dtype=jnp.bfloat16):
    """Precompute (host-side, once) all weight transforms:
       - W1.T / W2.T for (M,K)@(K,N) matmuls,
       - dense (16*D*D, C*D*D) matrix equivalent to the stride-1 ConvTranspose2d,
         acting on / producing the PyTorch NCHW flattening,
       - conv bias tiled over spatial positions."""
    # The module's final view requires the conv to preserve spatial size: D % 5 == 3.
    assert D % K == 3 and K == 5, "decoder requires input_dim % 5 == 3 (padding == 2)"
    p = K - D % K                      # PyTorch ConvTranspose2d padding (== 2)
    Cin = 16
    W1 = np.asarray(W1, np.float64)
    Wt = np.asarray(Wt, np.float64)    # (Cin, Cout, K, K)
    W2 = np.asarray(W2, np.float64)

    # Shift matrix: S[k, y, yy] = 1 iff yy == y + k - p and 0 <= yy < D.
    S = np.zeros((K, D, D), np.float64)
    for k in range(K):
        for y in range(D):
            yy = y + k - p
            if 0 <= yy < D:
                S[k, y, yy] = 1.0

    # Wc[(c,y,x), (o,yy,xx)] = Wt[c, o, yy - y + p, xx - x + p] (0 outside the kernel):
    # exactly ConvTranspose2d(stride=1, padding=p) on the NCHW row-major flattening.
    Wc = np.einsum('cokl,kyz,lxw->cyxozw', Wt, S, S).reshape(Cin * D * D, C * D * D)

    def to(a, dt):
        return jnp.asarray(np.asarray(a, np.float32), dtype=dt)

    return (
        to(W1.T, weight_dtype),                                        # (latent, 16*D*D)
        to(np.asarray(b1).reshape(1, -1), jnp.float32),                # (1, 16*D*D)
        to(Wc, weight_dtype),                                          # (16*D*D, C*D*D)
        to(np.repeat(np.asarray(bc), D * D).reshape(1, -1), jnp.float32),  # (1, C*D*D)
        to(W2.T, weight_dtype),                                        # (C*D*D, 2*C*D*D)
        to(np.asarray(b2).reshape(1, -1), jnp.float32),                # (1, 2*C*D*D)
    )


# --------------------------- numpy reference (PyTorch semantics) -------------

def _ref_conv_transpose(h, Wt, bc, p):
    B, Cin, D, _ = h.shape
    Cout, K = Wt.shape[1], Wt.shape[2]
    Do = (D - 1) - 2 * p + K
    out = np.zeros((B, Cout, Do, Do), dtype=np.float64)
    for i in range(D):
        for j in range(D):
            for ky in range(K):
                for kx in range(K):
                    yy, xx = i + ky - p, j + kx - p
                    if 0 <= yy < Do and 0 <= xx < Do:
                        out[:, :, yy, xx] += h[:, :, i, j] @ Wt[:, :, ky, kx]
    return out + bc.reshape(1, Cout, 1, 1)


def ref_forward(x, W1, b1, Wt, bc, W2, b2, D, p):
    lrelu = lambda a: np.where(a > 0, a, 0.01 * a)
    h = lrelu(x @ W1.T + b1).reshape(-1, 16, D, D)
    y = lrelu(_ref_conv_transpose(h, Wt, bc, p))
    y = y.reshape(y.shape[0], -1)
    return y @ W2.T + b2


# --------------------------- main ---------------------------------------------

if __name__ == "__main__":
    D, latent, C, K, B = 8, 16, 4, 5, 2        # input_dim=8 (8%5==3), channels=4
    key = jax.random.PRNGKey(0)
    ks = jax.random.split(key, 7)

    def u(k, shape, scale):
        return jax.random.uniform(k, shape, jnp.float32, -scale, scale)

    W1 = u(ks[0], (16 * D * D, latent), 1.0 / np.sqrt(latent))        # Linear(latent, 16*D*D)
    b1 = u(ks[1], (16 * D * D,), 1.0 / np.sqrt(latent))
    Wt = u(ks[2], (16, C, K, K), 1.0 / np.sqrt(16 * K * K))           # ConvTranspose2d weight
    bc = u(ks[3], (C,), 1.0 / np.sqrt(16 * K * K))
    W2 = u(ks[4], (2 * C * D * D, C * D * D), 1.0 / np.sqrt(C * D * D))
    b2 = u(ks[5], (2 * C * D * D,), 1.0 / np.sqrt(C * D * D))
    x = jax.random.normal(ks[6], (B, latent), jnp.float32)

    prepared = prepare_params(W1, b1, Wt, bc, W2, b2, D=D, C=C, K=K)  # once, outside jit
    fwd = jax.jit(decoder_forward)
    out = jax.block_until_ready(fwd(x, prepared))

    ref = ref_forward(np.asarray(x, np.float64), np.asarray(W1, np.float64),
                      np.asarray(b1, np.float64), np.asarray(Wt, np.float64),
                      np.asarray(bc, np.float64), np.asarray(W2, np.float64),
                      np.asarray(b2, np.float64), D, K - D % K)

    assert out.shape == (B, 2 * C * D * D), out.shape
    if not np.allclose(np.asarray(out), ref, atol=5e-2, rtol=5e-2):
        raise SystemExit(f"mismatch: max abs err = {np.max(np.abs(np.asarray(out) - ref))}")
    print("KERNEL_OK")
</pallas_src>

<mosaic_0001>
module attributes {stable_mosaic.version = 11 : i64} {
  func.func @_decoder_kernel(%arg0: i32, %arg1: memref<8x16xf32, #tpu.memory_space<vmem>>, %arg2: memref<16x1024xbf16, #tpu.memory_space<vmem>>, %arg3: memref<1x1024xf32, #tpu.memory_space<vmem>>, %arg4: memref<1024x256xbf16, #tpu.memory_space<vmem>>, %arg5: memref<1x256xf32, #tpu.memory_space<vmem>>, %arg6: memref<256x512xbf16, #tpu.memory_space<vmem>>, %arg7: memref<1x512xf32, #tpu.memory_space<vmem>>, %arg8: memref<8x512xf32, #tpu.memory_space<vmem>>) attributes {dimension_semantics = [#tpu.dimension_semantics<parallel>], iteration_bounds = array<i64: 1>, scalar_prefetch = 0 : i64, scratch_operands = 0 : i64, tpu.core_type = #tpu.core_type<tc>, window_params = [{transform_indices = @transform_0, window_bounds = array<i64: 8, 16>}, {pipeline_mode = #tpu.pipeline_mode<synchronous>, transform_indices = @transform_1, window_bounds = array<i64: 16, 1024>}, {pipeline_mode = #tpu.pipeline_mode<synchronous>, transform_indices = @transform_2, window_bounds = array<i64: 1, 1024>}, {pipeline_mode = #tpu.pipeline_mode<synchronous>, transform_indices = @transform_3, window_bounds = array<i64: 1024, 256>}, {pipeline_mode = #tpu.pipeline_mode<synchronous>, transform_indices = @transform_4, window_bounds = array<i64: 1, 256>}, {pipeline_mode = #tpu.pipeline_mode<synchronous>, transform_indices = @transform_5, window_bounds = array<i64: 256, 512>}, {pipeline_mode = #tpu.pipeline_mode<synchronous>, transform_indices = @transform_6, window_bounds = array<i64: 1, 512>}, {transform_indices = @transform_7, window_bounds = array<i64: 8, 512>}]} {
    %c0 = arith.constant 0 : index
    %c0_0 = arith.constant 0 : index
    %0 = vector.load %arg1[%c0, %c0_0] : memref<8x16xf32, #tpu.memory_space<vmem>>, vector<8x16xf32>
    %1 = arith.truncf %0 : vector<8x16xf32> to vector<8x16xbf16>
    %c0_1 = arith.constant 0 : index
    %c0_2 = arith.constant 0 : index
    %2 = vector.load %arg2[%c0_1, %c0_2] : memref<16x1024xbf16, #tpu.memory_space<vmem>>, vector<16x1024xbf16>
    %cst = arith.constant dense<0.000000e+00> : vector<8x1024xf32>
    %3 = tpu.matmul %1, %2, %cst {dimension_numbers = #tpu.dot_dimension_numbers<[1], [0], [0], [1], [0, 0, 1, 1], [], []>} : vector<8x16xbf16>, vector<16x1024xbf16>, vector<8x1024xf32> -> vector<8x1024xf32>
    %c0_3 = arith.constant 0 : index
    %c0_4 = arith.constant 0 : index
    %4 = vector.load %arg3[%c0_3, %c0_4] : memref<1x1024xf32, #tpu.memory_space<vmem>>, vector<1x1024xf32>
    %5 = vector.broadcast %4 : vector<1x1024xf32> to vector<8x1024xf32>
    %6 = arith.addf %3, %5 : vector<8x1024xf32>
    %cst_5 = arith.constant 0.00999999977 : f32
    %7 = vector.broadcast %cst_5 : f32 to vector<8x1024xf32>
    %8 = arith.mulf %7, %6 : vector<8x1024xf32>
    %9 = arith.maximumf %6, %8 : vector<8x1024xf32>
    %10 = arith.truncf %9 : vector<8x1024xf32> to vector<8x1024xbf16>
    %c0_6 = arith.constant 0 : index
    %c0_7 = arith.constant 0 : index
    %11 = vector.load %arg4[%c0_6, %c0_7] : memref<1024x256xbf16, #tpu.memory_space<vmem>>, vector<1024x256xbf16>
    %cst_8 = arith.constant dense<0.000000e+00> : vector<8x256xf32>
    %12 = tpu.matmul %10, %11, %cst_8 {dimension_numbers = #tpu.dot_dimension_numbers<[1], [0], [0], [1], [0, 0, 1, 1], [], []>} : vector<8x1024xbf16>, vector<1024x256xbf16>, vector<8x256xf32> -> vector<8x256xf32>
    %c0_9 = arith.constant 0 : index
    %c0_10 = arith.constant 0 : index
    %13 = vector.load %arg5[%c0_9, %c0_10] : memref<1x256xf32, #tpu.memory_space<vmem>>, vector<1x256xf32>
    %14 = vector.broadcast %13 : vector<1x256xf32> to vector<8x256xf32>
    %15 = arith.addf %12, %14 : vector<8x256xf32>
    %cst_11 = arith.constant 0.00999999977 : f32
    %16 = vector.broadcast %cst_11 : f32 to vector<8x256xf32>
    %17 = arith.mulf %16, %15 : vector<8x256xf32>
    %18 = arith.maximumf %15, %17 : vector<8x256xf32>
    %19 = arith.truncf %18 : vector<8x256xf32> to vector<8x256xbf16>
    %c0_12 = arith.constant 0 : index
    %c0_13 = arith.constant 0 : index
    %20 = vector.load %arg6[%c0_12, %c0_13] : memref<256x512xbf16, #tpu.memory_space<vmem>>, vector<256x512xbf16>
    %cst_14 = arith.constant dense<0.000000e+00> : vector<8x512xf32>
    %21 = tpu.matmul %19, %20, %cst_14 {dimension_numbers = #tpu.dot_dimension_numbers<[1], [0], [0], [1], [0, 0, 1, 1], [], []>} : vector<8x256xbf16>, vector<256x512xbf16>, vector<8x512xf32> -> vector<8x512xf32>
    %c0_15 = arith.constant 0 : index
    %c0_16 = arith.constant 0 : index
    %22 = vector.load %arg7[%c0_15, %c0_16] : memref<1x512xf32, #tpu.memory_space<vmem>>, vector<1x512xf32>
    %23 = vector.broadcast %22 : vector<1x512xf32> to vector<8x512xf32>
    %24 = arith.addf %21, %23 : vector<8x512xf32>
    %c0_17 = arith.constant 0 : index
    %c0_18 = arith.constant 0 : index
    %25 = vector.load %arg8[%c0_17, %c0_18] : memref<8x512xf32, #tpu.memory_space<vmem>>, vector<8x512xf32>
    tpu.vector_store %arg8[%c0_17, %c0_18], %24 {strides = array<i32>} : memref<8x512xf32, #tpu.memory_space<vmem>>, vector<8x512xf32>,
    return
  }
  func.func @transform_0(%arg0: i32) -> (i32, i32) {
    %c0_i32 = arith.constant 0 : i32
    %c0_i32_0 = arith.constant 0 : i32
    return %arg0, %c0_i32 : i32, i32
  }
  func.func @transform_1(%arg0: i32) -> (i32, i32) {
    %c0_i32 = arith.constant 0 : i32
    %c0_i32_0 = arith.constant 0 : i32
    %c0_i32_1 = arith.constant 0 : i32
    return %c0_i32, %c0_i32_0 : i32, i32
  }
  func.func @transform_2(%arg0: i32) -> (i32, i32) {
    %c0_i32 = arith.constant 0 : i32
    %c0_i32_0 = arith.constant 0 : i32
    %c0_i32_1 = arith.constant 0 : i32
    return %c0_i32, %c0_i32_0 : i32, i32
  }
  func.func @transform_3(%arg0: i32) -> (i32, i32) {
    %c0_i32 = arith.constant 0 : i32
    %c0_i32_0 = arith.constant 0 : i32
    %c0_i32_1 = arith.constant 0 : i32
    return %c0_i32, %c0_i32_0 : i32, i32
  }
  func.func @transform_4(%arg0: i32) -> (i32, i32) {
    %c0_i32 = arith.constant 0 : i32
    %c0_i32_0 = arith.constant 0 : i32
    %c0_i32_1 = arith.constant 0 : i32
    return %c0_i32, %c0_i32_0 : i32, i32
  }
  func.func @transform_5(%arg0: i32) -> (i32, i32) {
    %c0_i32 = arith.constant 0 : i32
    %c0_i32_0 = arith.constant 0 : i32
    %c0_i32_1 = arith.constant 0 : i32
    return %c0_i32, %c0_i32_0 : i32, i32
  }
  func.func @transform_6(%arg0: i32) -> (i32, i32) {
    %c0_i32 = arith.constant 0 : i32
    %c0_i32_0 = arith.constant 0 : i32
    %c0_i32_1 = arith.constant 0 : i32
    return %c0_i32, %c0_i32_0 : i32, i32
  }
  func.func @transform_7(%arg0: i32) -> (i32, i32) {
    %c0_i32 = arith.constant 0 : i32
    %c0_i32_0 = arith.constant 0 : i32
    return %arg0, %c0_i32 : i32, i32
  }
}

</mosaic_0001>

<llo_original>
// kernel: decoder_forward.1
$region0: #{decoder_forward.1}
  #allocation0 [shape = 'u32[]', space=smem, size = 0x4, offset = 0x4, fixed_abs, tag = 'smem constant byte address 0x4 - core index']
  #allocation1 [shape = 'u32[144,128]{1,0:T(1,128)}', space=vmem, size = 0x12000, scoped, tag = 'internal scratch']
  %s0 = inlined_call_operand.vmem [shape: f32[8,16], index: 0, kind: input, shape index: {}]
  %s1 = inlined_call_operand.hbm [shape: bf16[16,1024], index: 1, kind: input, shape index: {}]
  %s2 = inlined_call_operand.vmem [shape: f32[1,1024], index: 2, kind: input, shape index: {}]
  %s3 = inlined_call_operand.hbm [shape: bf16[1024,256], index: 3, kind: input, shape index: {}]
  %s4 = inlined_call_operand.vmem [shape: f32[1,256], index: 4, kind: input, shape index: {}]
  %s5 = inlined_call_operand.hbm [shape: bf16[256,512], index: 5, kind: input, shape index: {}]
  %s6 = inlined_call_operand.vmem [shape: f32[1,512], index: 6, kind: input, shape index: {}]
  %s7 = inlined_call_operand.vmem [shape: f32[8,512], index: 7, kind: output, shape index: {}]
  %s8 = sld [smem:[#allocation0]]
  $region50: #{decoder_forward.1} parent=0
    _
  %s10 = ssub.s32 1, %s8
  %s11 = scalar_select 0, %s10, %s8
  $region1: #{decoder_forward.1} parent=0
    #allocation2 [shape = 'u8[32768]{0}', space=vmem, size = 0x8000, scoped, tag = 'input window, operand 1, single buffered']
    #allocation3 [shape = 's32[1]{0}', space=sflag, size = 0x4, scoped, tag = 'scoped memory for decoder_forward.1']
    #allocation4 [shape = 'u8[524288]{0}', space=vmem, size = 0x80000, scoped, tag = 'input window, operand 3, single buffered']
    #allocation5 [shape = 's32[1]{0}', space=sflag, size = 0x4, scoped, tag = 'scoped memory for decoder_forward.1']
    #allocation6 [shape = 'u8[262144]{0}', space=vmem, size = 0x40000, scoped, tag = 'input window, operand 5, single buffered']
    %12 = vsyncpa [#allocation3], 0
    %13 = vsyncpa [#allocation5], 0
    // Predicated region
    $region2: #{decoder_forward.1} parent=1 // pred_check
      _
    $region3: #{decoder_forward.1} parent=1 // pred_check_branch
      %15 = sbr.rel (0) target = $region5
    $region4: #{decoder_forward.1} parent=1 // pred_region
      _
    $region5: #{decoder_forward.1} parent=1 // pred_fallthru
      _
    // Predicated region
    $region6: #{decoder_forward.1} parent=1 // pred_check
      _
    $region7: #{decoder_forward.1} parent=1 // pred_check_branch
      %17 = sbr.rel (0) target = $region9
    $region8: #{decoder_forward.1} parent=1 // pred_region
      %s19 = ssub.s32 1024, 1024
      %20 = vsyncadd [#allocation3], %s19
      %s21 = sshll.u32 [#allocation2], 4
      %s22 = int_to_ptr.vmem [resolvable:$true] %s21
      %27 = dma.hbm_to_vmem [thread:$0]  %s1, 1024, %s22, [#allocation3], 512, 512, 32
    $region9: #{decoder_forward.1} parent=1 // pred_fallthru
      _
    // Predicated region
    $region10: #{decoder_forward.1} parent=1 // pred_check
      _
    $region11: #{decoder_forward.1} parent=1 // pred_check_branch
      %29 = sbr.rel (0) target = $region13
    $region12: #{decoder_forward.1} parent=1 // pred_region
      _
    $region13: #{decoder_forward.1} parent=1 // pred_fallthru
      _
    // Predicated region
    $region14: #{decoder_forward.1} parent=1 // pred_check
      _
    $region15: #{decoder_forward.1} parent=1 // pred_check_branch
      %31 = sbr.rel (0) target = $region17
    $region16: #{decoder_forward.1} parent=1 // pred_region
      %s33 = ssub.s32 16384, 16384
      %34 = vsyncadd [#allocation5], %s33
      %s35 = sshll.u32 [#allocation4], 4
      %s36 = int_to_ptr.vmem [resolvable:$true] %s35
      %41 = dma.hbm_to_vmem [thread:$0]  %s3, 16384, %s36, [#allocation5], 128, 128, 8
    $region17: #{decoder_forward.1} parent=1 // pred_fallthru
      _
    // Predicated region
    $region18: #{decoder_forward.1} parent=1 // pred_check
      _
    $region19: #{decoder_forward.1} parent=1 // pred_check_branch
      %43 = sbr.rel (0) target = $region21
    $region20: #{decoder_forward.1} parent=1 // pred_region
      _
    $region21: #{decoder_forward.1} parent=1 // pred_fallthru
      _
    // Predicated region
    $region22: #{decoder_forward.1} parent=1 // pred_check
      _
    $region23: #{decoder_forward.1} parent=1 // pred_check_branch
      %45 = sbr.rel (0) target = $region25
    $region24: #{decoder_forward.1} parent=1 // pred_region
      %s47 = ssub.s32 8192, 8192
      %48 = vsyncadd [#allocation5], %s47
      %s49 = sshll.u32 [#allocation6], 4
      %s50 = int_to_ptr.vmem [resolvable:$true] %s49
      %55 = dma.hbm_to_vmem [thread:$0]  %s5, 8192, %s50, [#allocation5], 256, 256, 16
    $region25: #{decoder_forward.1} parent=1 // pred_fallthru
      _
    // Predicated region
    $region26: #{decoder_forward.1} parent=1 // pred_check
      _
    $region27: #{decoder_forward.1} parent=1 // pred_check_branch
      %57 = sbr.rel (0) target = $region29
    $region28: #{decoder_forward.1} parent=1 // pred_region
      _
    $region29: #{decoder_forward.1} parent=1 // pred_fallthru
      _
    // Predicated region
    $region30: #{decoder_forward.1} parent=1 // pred_check
      _
    $region31: #{decoder_forward.1} parent=1 // pred_check_branch
      %59 = sbr.rel (0) target = $region33
    $region32: #{decoder_forward.1} parent=1 // pred_region
      %60 = dma.done [#allocation3], 1024
    $region33: #{decoder_forward.1} parent=1 // pred_fallthru
      _
    // Predicated region
    $region34: #{decoder_forward.1} parent=1 // pred_check
      _
    $region35: #{decoder_forward.1} parent=1 // pred_check_branch
      %62 = sbr.rel (0) target = $region37
    $region36: #{decoder_forward.1} parent=1 // pred_region
      %63 = dma.done [#allocation5], 16384
    $region37: #{decoder_forward.1} parent=1 // pred_fallthru
      _
    // Predicated region
    $region38: #{decoder_forward.1} parent=1 // pred_check
      _
    $region39: #{decoder_forward.1} parent=1 // pred_check_branch
      %65 = sbr.rel (0) target = $region41
    $region40: #{decoder_forward.1} parent=1 // pred_region
      %66 = dma.done [#allocation5], 8192
    $region41: #{decoder_forward.1} parent=1 // pred_fallthru
      _
    %v68 = vld [vmem:[%s0] sm:$0xff]
    %v69 = vpack.c.bf16 %v68, %v68
    %v70 = vld [vmem:[#allocation2] sm:$0xff]
    %v71 = vld [vmem:[#allocation2 + $0x8] sm:$0xff]
    %v72 = vld [vmem:[#allocation2 + $0x10] sm:$0xff]
    %v73 = vld [vmem:[#allocation2 + $0x18] sm:$0xff]
    %v74 = vld [vmem:[#allocation2 + $0x20] sm:$0xff]
    %v75 = vld [vmem:[#allocation2 + $0x28] sm:$0xff]
    %v76 = vld [vmem:[#allocation2 + $0x30] sm:$0xff]
    %v77 = vld [vmem:[#allocation2 + $0x38] sm:$0xff]
    %v78 = vld [vmem:[%s2] sm:$0xff]
    %v80 = vlaneseq
    %v81 = vshrl.u32 %v80, 7
    %v82 = vsub.s32 0, %v81
    %v83 = vrot.slane %v78, %v82
    %v84 = vlaneseq
    %v85 = vshrl.u32 %v84, 7
    %v86 = vsub.s32 1, %v85
    %v87 = vrot.slane %v78, %v86
    %v88 = vlaneseq
    %v89 = vshrl.u32 %v88, 7
    %v90 = vsub.s32 2, %v89
    %v91 = vrot.slane %v78, %v90
    %v92 = vlaneseq
    %v93 = vshrl.u32 %v92, 7
    %v94 = vsub.s32 3, %v93
    %v95 = vrot.slane %v78, %v94
    %v96 = vlaneseq
    %v97 = vshrl.u32 %v96, 7
    %v98 = vsub.s32 4, %v97
    %v99 = vrot.slane %v78, %v98
    %v100 = vlaneseq
    %v101 = vshrl.u32 %v100, 7
    %v102 = vsub.s32 5, %v101
    %v103 = vrot.slane %v78, %v102
    %v104 = vlaneseq
    %v105 = vshrl.u32 %v104, 7
    %v106 = vsub.s32 6, %v105
    %v107 = vrot.slane %v78, %v106
    %v108 = vlaneseq
    %v109 = vshrl.u32 %v108, 7
    %v110 = vsub.s32 7, %v109
    %v111 = vrot.slane %v78, %v110
    %v128 = vunpack.c.l.b16 %v70
    %v129 = vunpack.c.h.b16 %v70
    %v130 = vunpack.c.l.b16 %v71
    %v131 = vunpack.c.h.b16 %v71
    %v132 = vunpack.c.l.b16 %v72
    %v133 = vunpack.c.h.b16 %v72
    %v134 = vunpack.c.l.b16 %v73
    %v135 = vunpack.c.h.b16 %v73
    %v136 = vunpack.c.l.b16 %v74
    %v137 = vunpack.c.h.b16 %v74
    %v138 = vunpack.c.l.b16 %v75
    %v139 = vunpack.c.h.b16 %v75
    %v140 = vunpack.c.l.b16 %v76
    %v141 = vunpack.c.h.b16 %v76
    %v142 = vunpack.c.l.b16 %v77
    %v143 = vunpack.c.h.b16 %v77
    %v144 = vpack.c.b16 %v136, %v128
    %v145 = vpack.c.b16 %v137, %v129
    %v146 = vpack.c.b16 %v138, %v130
    %v147 = vpack.c.b16 %v139, %v131
    %v148 = vpack.c.b16 %v140, %v132
    %v149 = vpack.c.b16 %v141, %v133
    %v150 = vpack.c.b16 %v142, %v134
    %v151 = vpack.c.b16 %v143, %v135
    %vm160 = vcmask 130048
    %v162 = vsel %vm160, %v69, 0
    %164 = vmatprep.subr.bf16.mxu0 %v145
    %165 = vmatpush1.bf16.msra.mxu0 %v144
    %166 = vmatprep.subr.bf16.mxu0 0
    %167 = vmatpush1.bf16.msra.mxu0 0
    %168 = vmatprep.subr.bf16.mxu0 0
    %169 = vmatpush1.bf16.msra.mxu0 0
    %170 = vmatprep.subr.bf16.mxu0 0
    %171 = vmatpush1.bf16.msra.mxu0 0
    %172 = vmatprep.subr.bf16.mxu0 0
    %173 = vmatpush1.bf16.msra.mxu0 0
    %174 = vmatprep.subr.bf16.mxu0 0
    %175 = vmatpush1.bf16.msra.mxu0 0
    %176 = vmatprep.subr.bf16.mxu0 0
    %177 = vmatpush1.bf16.msra.mxu0 0
    %178 = vmatprep.subr.bf16.mxu0 0
    %179 = vmatpush1.bf16.msra.mxu0 0
    %180 = vmatprep.subr.bf16.mxu0 0
    %181 = vmatpush1.bf16.msra.mxu0 0
    %182 = vmatprep.subr.bf16.mxu0 0
    %183 = vmatpush1.bf16.msra.mxu0 0
    %184 = vmatprep.subr.bf16.mxu0 0
    %185 = vmatpush1.bf16.msra.mxu0 0
    %186 = vmatprep.subr.bf16.mxu0 0
    %187 = vmatpush1.bf16.msra.mxu0 0
    %188 = vmatprep.subr.bf16.mxu0 0
    %189 = vmatpush1.bf16.msra.mxu0 0
    %190 = vmatprep.subr.bf16.mxu0 0
    %191 = vmatpush1.bf16.msra.mxu0 0
    %192 = vmatprep.subr.bf16.mxu0 0
    %193 = vmatpush1.bf16.msra.mxu0 0
    %194 = vmatprep.subr.bf16.mxu0 0
    %195 = vmatpush1.bf16.msra.mxu0 0
    %196 = vmatprep.mubr.bf16.mxu0 0
    %197 = vmatmul.mubr.bf16.gmra.mrb[0].mxu0 %v162
    %v198 = vpop.f32.mrb[0].mxu0
    %v199 = vadd.f32 %v83, %v198
    %v200 = vpop.f32.mrb[0].mxu0
    %v201 = vadd.f32 %v87, %v200
    %v202 = vpop.f32.mrb[0].mxu0
    %v203 = vpop.f32.mrb[0].mxu0
    %204 = vdwg.mxu0
    %205 = vmatprep.subr.bf16.mxu0 %v147
    %206 = vmatpush1.bf16.msra.mxu0 %v146
    %207 = vmatprep.subr.bf16.mxu0 0
    %208 = vmatpush1.bf16.msra.mxu0 0
    %209 = vmatprep.subr.bf16.mxu0 0
    %210 = vmatpush1.bf16.msra.mxu0 0
    %211 = vmatprep.subr.bf16.mxu0 0
    %212 = vmatpush1.bf16.msra.mxu0 0
    %213 = vmatprep.subr.bf16.mxu0 0
    %214 = vmatpush1.bf16.msra.mxu0 0
    %215 = vmatprep.subr.bf16.mxu0 0
    %216 = vmatpush1.bf16.msra.mxu0 0
    %217 = vmatprep.subr.bf16.mxu0 0
    %218 = vmatpush1.bf16.msra.mxu0 0
    %219 = vmatprep.subr.bf16.mxu0 0
    %220 = vmatpush1.bf16.msra.mxu0 0
    %221 = vmatprep.subr.bf16.mxu0 0
    %222 = vmatpush1.bf16.msra.mxu0 0
    %223 = vmatprep.subr.bf16.mxu0 0
    %224 = vmatpush1.bf16.msra.mxu0 0
    %225 = vmatprep.subr.bf16.mxu0 0
    %226 = vmatpush1.bf16.msra.mxu0 0
    %227 = vmatprep.subr.bf16.mxu0 0
    %228 = vmatpush1.bf16.msra.mxu0 0
    %229 = vmatprep.subr.bf16.mxu0 0
    %230 = vmatpush1.bf16.msra.mxu0 0
    %231 = vmatprep.subr.bf16.mxu0 0
    %232 = vmatpush1.bf16.msra.mxu0 0
    %233 = vmatprep.subr.bf16.mxu0 0
    %234 = vmatpush1.bf16.msra.mxu0 0
    %235 = vmatprep.subr.bf16.mxu0 0
    %236 = vmatpush1.bf16.msra.mxu0 0
    %237 = vmatprep.mubr.bf16.mxu0 0
    %238 = vmatmul.mubr.bf16.gmra.mrb[0].mxu0 %v162
    %v239 = vpop.f32.mrb[0].mxu0
    %v240 = vadd.f32 %v91, %v239
    %v241 = vpop.f32.mrb[0].mxu0
    %v242 = vadd.f32 %v95, %v241
    %v243 = vpop.f32.mrb[0].mxu0
    %v244 = vpop.f32.mrb[0].mxu0
    %245 = vdwg.mxu0
    %246 = vmatprep.subr.bf16.mxu0 %v149
    %247 = vmatpush1.bf16.msra.mxu0 %v148
    %248 = vmatprep.subr.bf16.mxu0 0
    %249 = vmatpush1.bf16.msra.mxu0 0
    %250 = vmatprep.subr.bf16.mxu0 0
    %251 = vmatpush1.bf16.msra.mxu0 0
    %252 = vmatprep.subr.bf16.mxu0 0
    %253 = vmatpush1.bf16.msra.mxu0 0
    %254 = vmatprep.subr.bf16.mxu0 0
    %255 = vmatpush1.bf16.msra.mxu0 0
    %256 = vmatprep.subr.bf16.mxu0 0
    %257 = vmatpush1.bf16.msra.mxu0 0
    %258 = vmatprep.subr.bf16.mxu0 0
    %259 = vmatpush1.bf16.msra.mxu0 0
    %260 = vmatprep.subr.bf16.mxu0 0
    %261 = vmatpush1.bf16.msra.mxu0 0
    %262 = vmatprep.subr.bf16.mxu0 0
    %263 = vmatpush1.bf16.msra.mxu0 0
    %264 = vmatprep.subr.bf16.mxu0 0
    %265 = vmatpush1.bf16.msra.mxu0 0
    %266 = vmatprep.subr.bf16.mxu0 0
    %267 = vmatpush1.bf16.msra.mxu0 0
    %268 = vmatprep.subr.bf16.mxu0 0
    %269 = vmatpush1.bf16.msra.mxu0 0
    %270 = vmatprep.subr.bf16.mxu0 0
    %271 = vmatpush1.bf16.msra.mxu0 0
    %272 = vmatprep.subr.bf16.mxu0 0
    %273 = vmatpush1.bf16.msra.mxu0 0
    %274 = vmatprep.subr.bf16.mxu0 0
    %275 = vmatpush1.bf16.msra.mxu0 0
    %276 = vmatprep.subr.bf16.mxu0 0
    %277 = vmatpush1.bf16.msra.mxu0 0
    %278 = vmatprep.mubr.bf16.mxu0 0
    %279 = vmatmul.mubr.bf16.gmra.mrb[0].mxu0 %v162
    %v280 = vpop.f32.mrb[0].mxu0
    %v281 = vadd.f32 %v99, %v280
    %v282 = vpop.f32.mrb[0].mxu0
    %v283 = vadd.f32 %v103, %v282
    %v284 = vpop.f32.mrb[0].mxu0
    %v285 = vpop.f32.mrb[0].mxu0
    %286 = vdwg.mxu0
    %287 = vmatprep.subr.bf16.mxu0 %v151
    %288 = vmatpush1.bf16.msra.mxu0 %v150
    %289 = vmatprep.subr.bf16.mxu0 0
    %290 = vmatpush1.bf16.msra.mxu0 0
    %291 = vmatprep.subr.bf16.mxu0 0
    %292 = vmatpush1.bf16.msra.mxu0 0
    %293 = vmatprep.subr.bf16.mxu0 0
    %294 = vmatpush1.bf16.msra.mxu0 0
    %295 = vmatprep.subr.bf16.mxu0 0
    %296 = vmatpush1.bf16.msra.mxu0 0
    %297 = vmatprep.subr.bf16.mxu0 0
    %298 = vmatpush1.bf16.msra.mxu0 0
    %299 = vmatprep.subr.bf16.mxu0 0
    %300 = vmatpush1.bf16.msra.mxu0 0
    %301 = vmatprep.subr.bf16.mxu0 0
    %302 = vmatpush1.bf16.msra.mxu0 0
    %303 = vmatprep.subr.bf16.mxu0 0
    %304 = vmatpush1.bf16.msra.mxu0 0
    %305 = vmatprep.subr.bf16.mxu0 0
    %306 = vmatpush1.bf16.msra.mxu0 0
    %307 = vmatprep.subr.bf16.mxu0 0
    %308 = vmatpush1.bf16.msra.mxu0 0
    %309 = vmatprep.subr.bf16.mxu0 0
    %310 = vmatpush1.bf16.msra.mxu0 0
    %311 = vmatprep.subr.bf16.mxu0 0
    %312 = vmatpush1.bf16.msra.mxu0 0
    %313 = vmatprep.subr.bf16.mxu0 0
    %314 = vmatpush1.bf16.msra.mxu0 0
    %315 = vmatprep.subr.bf16.mxu0 0
    %316 = vmatpush1.bf16.msra.mxu0 0
    %317 = vmatprep.subr.bf16.mxu0 0
    %318 = vmatpush1.bf16.msra.mxu0 0
    %319 = vmatprep.mubr.bf16.mxu0 0
    %320 = vmatmul.mubr.bf16.gmra.mrb[0].mxu0 %v162
    %v321 = vpop.f32.mrb[0].mxu0
    %v322 = vadd.f32 %v107, %v321
    %v323 = vpop.f32.mrb[0].mxu0
    %v324 = vadd.f32 %v111, %v323
    %v325 = vpop.f32.mrb[0].mxu0
    %v326 = vpop.f32.mrb[0].mxu0
    %327 = vdwg.mxu0
    %v328 = vmul.f32 %v199, 0.01
    %v329 = vmul.f32 %v201, 0.01
    %v330 = vmul.f32 %v240, 0.01
    %v331 = vmul.f32 %v242, 0.01
    %v332 = vmul.f32 %v281, 0.01
    %v333 = vmul.f32 %v283, 0.01
    %v334 = vmul.f32 %v322, 0.01
    %v335 = vmul.f32 %v324, 0.01
    %v336 = vmax.f32 %v199, %v328
    %v337 = vmax.f32 %v201, %v329
    %v338 = vmax.f32 %v240, %v330
    %v339 = vmax.f32 %v242, %v331
    %v340 = vmax.f32 %v281, %v332
    %v341 = vmax.f32 %v283, %v333
    %v342 = vmax.f32 %v322, %v334
    %v343 = vmax.f32 %v324, %v335
    %v344 = vpack.c.bf16 %v336, %v336
    %v345 = vpack.c.bf16 %v337, %v337
    %v346 = vpack.c.bf16 %v338, %v338
    %v347 = vpack.c.bf16 %v339, %v339
    %v348 = vpack.c.bf16 %v340, %v340
    %v349 = vpack.c.bf16 %v341, %v341
    %v350 = vpack.c.bf16 %v342, %v342
    %v351 = vpack.c.bf16 %v343, %v343
    %v352 = vld [vmem:[#allocation4] sm:$0xff]
    %v353 = vld [vmem:[#allocation4 + $0x8] sm:$0xff]
    %v354 = vld [vmem:[#allocation4 + $0x10] sm:$0xff]
    %v355 = vld [vmem:[#allocation4 + $0x18] sm:$0xff]
    %v356 = vld [vmem:[#allocation4 + $0x20] sm:$0xff]
    %v357 = vld [vmem:[#allocation4 + $0x28] sm:$0xff]
    %v358 = vld [vmem:[#allocation4 + $0x30] sm:$0xff]
    %v359 = vld [vmem:[#allocation4 + $0x38] sm:$0xff]
    %v360 = vld [vmem:[#allocation4 + $0x40] sm:$0xff]
    %v361 = vld [vmem:[#allocation4 + $0x48] sm:$0xff]
    %v362 = vld [vmem:[#allocation4 + $0x50] sm:$0xff]
    %v363 = vld [vmem:[#allocation4 + $0x58] sm:$0xff]
    %v364 = vld [vmem:[#allocation4 + $0x60] sm:$0xff]
    %v365 = vld [vmem:[#allocation4 + $0x68] sm:$0xff]
    %v366 = vld [vmem:[#allocation4 + $0x70] sm:$0xff]
    %v367 = vld [vmem:[#allocation4 + $0x78] sm:$0xff]
    %v368 = vld [vmem:[#allocation4 + $0x80] sm:$0xff]
    %v369 = vld [vmem:[#allocation4 + $0x88] sm:$0xff]
    %v370 = vld [vmem:[#allocation4 + $0x90] sm:$0xff]
    %v371 = vld [vmem:[#allocation4 + $0x98] sm:$0xff]
    %v372 = vld [vmem:[#allocation4 + $0xa0] sm:$0xff]
    %v373 = vld [vmem:[#allocation4 + $0xa8] sm:$0xff]
    %v374 = vld [vmem:[#allocation4 + $0xb0] sm:$0xff]
    %v375 = vld [vmem:[#allocation4 + $0xb8] sm:$0xff]
    %v376 = vld [vmem:[#allocation4 + $0xc0] sm:$0xff]
    %v377 = vld [vmem:[#allocation4 + $0xc8] sm:$0xff]
    %v378 = vld [vmem:[#allocation4 + $0xd0] sm:$0xff]
    %v379 = vld [vmem:[#allocation4 + $0xd8] sm:$0xff]
    %v380 = vld [vmem:[#allocation4 + $0xe0] sm:$0xff]
    %v381 = vld [vmem:[#allocation4 + $0xe8] sm:$0xff]
    %v382 = vld [vmem:[#allocation4 + $0xf0] sm:$0xff]
    %v383 = vld [vmem:[#allocation4 + $0xf8] sm:$0xff]
    %v384 = vld [vmem:[#allocation4 + $0x100] sm:$0xff]
    %v385 = vld [vmem:[#allocation4 + $0x108] sm:$0xff]
    %v386 = vld [vmem:[#allocation4 + $0x110] sm:$0xff]
    %v387 = vld [vmem:[#allocation4 + $0x118] sm:$0xff]
    %v388 = vld [vmem:[#allocation4 + $0x120] sm:$0xff]
    %v389 = vld [vmem:[#allocation4 + $0x128] sm:$0xff]
    %v390 = vld [vmem:[#allocation4 + $0x130] sm:$0xff]
    %v391 = vld [vmem:[#allocation4 + $0x138] sm:$0xff]
    %v392 = vld [vmem:[#allocation4 + $0x140] sm:$0xff]
    %v393 = vld [vmem:[#allocation4 + $0x148] sm:$0xff]
    %v394 = vld [vmem:[#allocation4 + $0x150] sm:$0xff]
    %v395 = vld [vmem:[#allocation4 + $0x158] sm:$0xff]
    %v396 = vld [vmem:[#allocation4 + $0x160] sm:$0xff]
    %v397 = vld [vmem:[#allocation4 + $0x168] sm:$0xff]
    %v398 = vld [vmem:[#allocation4 + $0x170] sm:$0xff]
    %v399 = vld [vmem:[#allocation4 + $0x178] sm:$0xff]
    %v400 = vld [vmem:[#allocation4 + $0x180] sm:$0xff]
    %v401 = vld [vmem:[#allocation4 + $0x188] sm:$0xff]
    %v402 = vld [vmem:[#allocation4 + $0x190] sm:$0xff]
    %v403 = vld [vmem:[#allocation4 + $0x198] sm:$0xff]
    %v404 = vld [vmem:[#allocation4 + $0x1a0] sm:$0xff]
    %v405 = vld [vmem:[#allocation4 + $0x1a8] sm:$0xff]
    %v406 = vld [vmem:[#allocation4 + $0x1b0] sm:$0xff]
    %v407 = vld [vmem:[#allocation4 + $0x1b8] sm:$0xff]
    %v408 = vld [vmem:[#allocation4 + $0x1c0] sm:$0xff]
    %v409 = vld [vmem:[#allocation4 + $0x1c8] sm:$0xff]
    %v410 = vld [vmem:[#allocation4 + $0x1d0] sm:$0xff]
    %v411 = vld [vmem:[#allocation4 + $0x1d8] sm:$0xff]
    %v412 = vld [vmem:[#allocation4 + $0x1e0] sm:$0xff]
    %v413 = vld [vmem:[#allocation4 + $0x1e8] sm:$0xff]
    %v414 = vld [vmem:[#allocation4 + $0x1f0] sm:$0xff]
    %v415 = vld [vmem:[#allocation4 + $0x1f8] sm:$0xff]
    %v416 = vld [vmem:[#allocation4 + $0x200] sm:$0xff]
    %v417 = vld [vmem:[#allocation4 + $0x208] sm:$0xff]
    %v418 = vld [vmem:[#allocation4 + $0x210] sm:$0xff]
    %v419 = vld [vmem:[#allocation4 + $0x218] sm:$0xff]
    %v420 = vld [vmem:[#allocation4 + $0x220] sm:$0xff]
    %v421 = vld [vmem:[#allocation4 + $0x228] sm:$0xff]
    %v422 = vld [vmem:[#allocation4 + $0x230] sm:$0xff]
    %v423 = vld [vmem:[#allocation4 + $0x238] sm:$0xff]
    %v424 = vld [vmem:[#allocation4 + $0x240] sm:$0xff]
    %v425 = vld [vmem:[#allocation4 + $0x248] sm:$0xff]
    %v426 = vld [vmem:[#allocation4 + $0x250] sm:$0xff]
    %v427 = vld [vmem:[#allocation4 + $0x258] sm:$0xff]
    %v428 = vld [vmem:[#allocation4 + $0x260] sm:$0xff]
    %v429 = vld [vmem:[#allocation4 + $0x268] sm:$0xff]
    %v430 = vld [vmem:[#allocation4 + $0x270] sm:$0xff]
    %v431 = vld [vmem:[#allocation4 + $0x278] sm:$0xff]
    %v432 = vld [vmem:[#allocation4 + $0x280] sm:$0xff]
    %v433 = vld [vmem:[#allocation4 + $0x288] sm:$0xff]
    %v434 = vld [vmem:[#allocation4 + $0x290] sm:$0xff]
    %v435 = vld [vmem:[#allocation4 + $0x298] sm:$0xff]
    %v436 = vld [vmem:[#allocation4 + $0x2a0] sm:$0xff]
    %v437 = vld [vmem:[#allocation4 + $0x2a8] sm:$0xff]
    %v438 = vld [vmem:[#allocation4 + $0x2b0] sm:$0xff]
    %v439 = vld [vmem:[#allocation4 + $0x2b8] sm:$0xff]
    %v440 = vld [vmem:[#allocation4 + $0x2c0] sm:$0xff]
    %v441 = vld [vmem:[#allocation4 + $0x2c8] sm:$0xff]
    %v442 = vld [vmem:[#allocation4 + $0x2d0] sm:$0xff]
    %v443 = vld [vmem:[#allocation4 + $0x2d8] sm:$0xff]
    %v444 = vld [vmem:[#allocation4 + $0x2e0] sm:$0xff]
    %v445 = vld [vmem:[#allocation4 + $0x2e8] sm:$0xff]
    %v446 = vld [vmem:[#allocation4 + $0x2f0] sm:$0xff]
    %v447 = vld [vmem:[#allocation4 + $0x2f8] sm:$0xff]
    %v448 = vld [vmem:[#allocation4 + $0x300] sm:$0xff]
    %v449 = vld [vmem:[#allocation4 + $0x308] sm:$0xff]
    %v450 = vld [vmem:[#allocation4 + $0x310] sm:$0xff]
    %v451 = vld [vmem:[#allocation4 + $0x318] sm:$0xff]
    %v452 = vld [vmem:[#allocation4 + $0x320] sm:$0xff]
    %v453 = vld [vmem:[#allocation4 + $0x328] sm:$0xff]
    %v454 = vld [vmem:[#allocation4 + $0x330] sm:$0xff]
    %v455 = vld [vmem:[#allocation4 + $0x338] sm:$0xff]
    %v456 = vld [vmem:[#allocation4 + $0x340] sm:$0xff]
    %v457 = vld [vmem:[#allocation4 + $0x348] sm:$0xff]
    %v458 = vld [vmem:[#allocation4 + $0x350] sm:$0xff]
    %v459 = vld [vmem:[#allocation4 + $0x358] sm:$0xff]
    %v460 = vld [vmem:[#allocation4 + $0x360] sm:$0xff]
    %v461 = vld [vmem:[#allocation4 + $0x368] sm:$0xff]
    %v462 = vld [vmem:[#allocation4 + $0x370] sm:$0xff]
    %v463 = vld [vmem:[#allocation4 + $0x378] sm:$0xff]
    %v464 = vld [vmem:[#allocation4 + $0x380] sm:$0xff]
    %v465 = vld [vmem:[#allocation4 + $0x388] sm:$0xff]
    %v466 = vld [vmem:[#allocation4 + $0x390] sm:$0xff]
    %v467 = vld [vmem:[#allocation4 + $0x398] sm:$0xff]
    %v468 = vld [vmem:[#allocation4 + $0x3a0] sm:$0xff]
    %v469 = vld [vmem:[#allocation4 + $0x3a8] sm:$0xff]
    %v470 = vld [vmem:[#allocation4 + $0x3b0] sm:$0xff]
    %v471 = vld [vmem:[#allocation4 + $0x3b8] sm:$0xff]
    %v472 = vld [vmem:[#allocation4 + $0x3c0] sm:$0xff]
    %v473 = vld [vmem:[#allocation4 + $0x3c8] sm:$0xff]
    %v474 = vld [vmem:[#allocation4 + $0x3d0] sm:$0xff]
    %v475 = vld [vmem:[#allocation4 + $0x3d8] sm:$0xff]
    %v476 = vld [vmem:[#allocation4 + $0x3e0] sm:$0xff]
    %v477 = vld [vmem:[#allocation4 + $0x3e8] sm:$0xff]
    %v478 = vld [vmem:[#allocation4 + $0x3f0] sm:$0xff]
    %v479 = vld [vmem:[#allocation4 + $0x3f8] sm:$0xff]
    %v480 = vld [vmem:[%s4] sm:$0x3]
    %v482 = vlaneseq
    %v483 = vshrl.u32 %v482, 7
    %v484 = vsub.s32 0, %v483
    %v485 = vrot.slane %v480, %v484
    %v486 = vlaneseq
    %v487 = vshrl.u32 %v486, 7
    %v488 = vsub.s32 1, %v487
    %v489 = vrot.slane %v480, %v488
    %v620 = vunpack.c.l.b16 %v352
    %v621 = vunpack.c.h.b16 %v352
    %v622 = vunpack.c.l.b16 %v353
    %v623 = vunpack.c.h.b16 %v353
    %v624 = vunpack.c.l.b16 %v354
    %v625 = vunpack.c.h.b16 %v354
    %v626 = vunpack.c.l.b16 %v355
    %v627 = vunpack.c.h.b16 %v355
    %v628 = vunpack.c.l.b16 %v356
    %v629 = vunpack.c.h.b16 %v356
    %v630 = vunpack.c.l.b16 %v357
    %v631 = vunpack.c.h.b16 %v357
    %v632 = vunpack.c.l.b16 %v358
    %v633 = vunpack.c.h.b16 %v358
    %v634 = vunpack.c.l.b16 %v359
    %v635 = vunpack.c.h.b16 %v359
    %v636 = vunpack.c.l.b16 %v360
    %v637 = vunpack.c.h.b16 %v360
    %v638 = vunpack.c.l.b16 %v361
    %v639 = vunpack.c.h.b16 %v361
    %v640 = vunpack.c.l.b16 %v362
    %v641 = vunpack.c.h.b16 %v362
    %v642 = vunpack.c.l.b16 %v363
    %v643 = vunpack.c.h.b16 %v363
    %v644 = vunpack.c.l.b16 %v364
    %v645 = vunpack.c.h.b16 %v364
    %v646 = vunpack.c.l.b16 %v365
    %v647 = vunpack.c.h.b16 %v365
    %v648 = vunpack.c.l.b16 %v366
    %v649 = vunpack.c.h.b16 %v366
    %v650 = vunpack.c.l.b16 %v367
    %v651 = vunpack.c.h.b16 %v367
    %v652 = vunpack.c.l.b16 %v368
    %v653 = vunpack.c.h.b16 %v368
    %v654 = vunpack.c.l.b16 %v369
    %v655 = vunpack.c.h.b16 %v369
    %v656 = vunpack.c.l.b16 %v370
    %v657 = vunpack.c.h.b16 %v370
    %v658 = vunpack.c.l.b16 %v371
    %v659 = vunpack.c.h.b16 %v371
    %v660 = vunpack.c.l.b16 %v372
    %v661 = vunpack.c.h.b16 %v372
    %v662 = vunpack.c.l.b16 %v373
    %v663 = vunpack.c.h.b16 %v373
    %v664 = vunpack.c.l.b16 %v374
    %v665 = vunpack.c.h.b16 %v374
    %v666 = vunpack.c.l.b16 %v375
    %v667 = vunpack.c.h.b16 %v375
    %v668 = vunpack.c.l.b16 %v376
    %v669 = vunpack.c.h.b16 %v376
    %v670 = vunpack.c.l.b16 %v377
    %v671 = vunpack.c.h.b16 %v377
    %v672 = vunpack.c.l.b16 %v378
    %v673 = vunpack.c.h.b16 %v378
    %v674 = vunpack.c.l.b16 %v379
    %v675 = vunpack.c.h.b16 %v379
    %v676 = vunpack.c.l.b16 %v380
    %v677 = vunpack.c.h.b16 %v380
    %v678 = vunpack.c.l.b16 %v381
    %v679 = vunpack.c.h.b16 %v381
    %v680 = vunpack.c.l.b16 %v382
    %v681 = vunpack.c.h.b16 %v382
    %v682 = vunpack.c.l.b16 %v383
    %v683 = vunpack.c.h.b16 %v383
    %v684 = vunpack.c.l.b16 %v384
    %v685 = vunpack.c.h.b16 %v384
    %v686 = vunpack.c.l.b16 %v385
    %v687 = vunpack.c.h.b16 %v385
    %v688 = vunpack.c.l.b16 %v386
    %v689 = vunpack.c.h.b16 %v386
    %v690 = vunpack.c.l.b16 %v387
    %v691 = vunpack.c.h.b16 %v387
    %v692 = vunpack.c.l.b16 %v388
    %v693 = vunpack.c.h.b16 %v388
    %v694 = vunpack.c.l.b16 %v389
    %v695 = vunpack.c.h.b16 %v389
    %v696 = vunpack.c.l.b16 %v390
    %v697 = vunpack.c.h.b16 %v390
    %v698 = vunpack.c.l.b16 %v391
    %v699 = vunpack.c.h.b16 %v391
    %v700 = vunpack.c.l.b16 %v392
    %v701 = vunpack.c.h.b16 %v392
    %v702 = vunpack.c.l.b16 %v393
    %v703 = vunpack.c.h.b16 %v393
    %v704 = vunpack.c.l.b16 %v394
    %v705 = vunpack.c.h.b16 %v394
    %v706 = vunpack.c.l.b16 %v395
    %v707 = vunpack.c.h.b16 %v395
    %v708 = vunpack.c.l.b16 %v396
    %v709 = vunpack.c.h.b16 %v396
    %v710 = vunpack.c.l.b16 %v397
    %v711 = vunpack.c.h.b16 %v397
    %v712 = vunpack.c.l.b16 %v398
    %v713 = vunpack.c.h.b16 %v398
    %v714 = vunpack.c.l.b16 %v399
    %v715 = vunpack.c.h.b16 %v399
    %v716 = vunpack.c.l.b16 %v400
    %v717 = vunpack.c.h.b16 %v400
    %v718 = vunpack.c.l.b16 %v401
    %v719 = vunpack.c.h.b16 %v401
    %v720 = vunpack.c.l.b16 %v402
    %v721 = vunpack.c.h.b16 %v402
    %v722 = vunpack.c.l.b16 %v403
    %v723 = vunpack.c.h.b16 %v403
    %v724 = vunpack.c.l.b16 %v404
    %v725 = vunpack.c.h.b16 %v404
    %v726 = vunpack.c.l.b16 %v405
    %v727 = vunpack.c.h.b16 %v405
    %v728 = vunpack.c.l.b16 %v406
    %v729 = vunpack.c.h.b16 %v406
    %v730 = vunpack.c.l.b16 %v407
    %v731 = vunpack.c.h.b16 %v407
    %v732 = vunpack.c.l.b16 %v408
    %v733 = vunpack.c.h.b16 %v408
    %v734 = vunpack.c.l.b16 %v409
    %v735 = vunpack.c.h.b16 %v409
    %v736 = vunpack.c.l.b16 %v410
    %v737 = vunpack.c.h.b16 %v410
    %v738 = vunpack.c.l.b16 %v411
    %v739 = vunpack.c.h.b16 %v411
    %v740 = vunpack.c.l.b16 %v412
    %v741 = vunpack.c.h.b16 %v412
    %v742 = vunpack.c.l.b16 %v413
    %v743 = vunpack.c.h.b16 %v413
    %v744 = vunpack.c.l.b16 %v414
    %v745 = vunpack.c.h.b16 %v414
    %v746 = vunpack.c.l.b16 %v415
    %v747 = vunpack.c.h.b16 %v415
    %v748 = vunpack.c.l.b16 %v416
    %v749 = vunpack.c.h.b16 %v416
    %v750 = vunpack.c.l.b16 %v417
    %v751 = vunpack.c.h.b16 %v417
    %v752 = vunpack.c.l.b16 %v418
    %v753 = vunpack.c.h.b16 %v418
    %v754 = vunpack.c.l.b16 %v419
    %v755 = vunpack.c.h.b16 %v419
    %v756 = vunpack.c.l.b16 %v420
    %v757 = vunpack.c.h.b16 %v420
    %v758 = vunpack.c.l.b16 %v421
    %v759 = vunpack.c.h.b16 %v421
    %v760 = vunpack.c.l.b16 %v422
    %v761 = vunpack.c.h.b16 %v422
    %v762 = vunpack.c.l.b16 %v423
    %v763 = vunpack.c.h.b16 %v423
    %v764 = vunpack.c.l.b16 %v424
    %v765 = vunpack.c.h.b16 %v424
    %v766 = vunpack.c.l.b16 %v425
    %v767 = vunpack.c.h.b16 %v425
    %v768 = vunpack.c.l.b16 %v426
    %v769 = vunpack.c.h.b16 %v426
    %v770 = vunpack.c.l.b16 %v427
    %v771 = vunpack.c.h.b16 %v427
    %v772 = vunpack.c.l.b16 %v428
    %v773 = vunpack.c.h.b16 %v428
    %v774 = vunpack.c.l.b16 %v429
    %v775 = vunpack.c.h.b16 %v429
    %v776 = vunpack.c.l.b16 %v430
    %v777 = vunpack.c.h.b16 %v430
    %v778 = vunpack.c.l.b16 %v431
    %v779 = vunpack.c.h.b16 %v431
    %v780 = vunpack.c.l.b16 %v432
    %v781 = vunpack.c.h.b16 %v432
    %v782 = vunpack.c.l.b16 %v433
    %v783 = vunpack.c.h.b16 %v433
    %v784 = vunpack.c.l.b16 %v434
    %v785 = vunpack.c.h.b16 %v434
    %v786 = vunpack.c.l.b16 %v435
    %v787 = vunpack.c.h.b16 %v435
    %v788 = vunpack.c.l.b16 %v436
    %v789 = vunpack.c.h.b16 %v436
    %v790 = vunpack.c.l.b16 %v437
    %v791 = vunpack.c.h.b16 %v437
    %v792 = vunpack.c.l.b16 %v438
    %v793 = vunpack.c.h.b16 %v438
    %v794 = vunpack.c.l.b16 %v439
    %v795 = vunpack.c.h.b16 %v439
    %v796 = vunpack.c.l.b16 %v440
    %v797 = vunpack.c.h.b16 %v440
    %v798 = vunpack.c.l.b16 %v441
    %v799 = vunpack.c.h.b16 %v441
    %v800 = vunpack.c.l.b16 %v442
    %v801 = vunpack.c.h.b16 %v442
    %v802 = vunpack.c.l.b16 %v443
    %v803 = vunpack.c.h.b16 %v443
    %v804 = vunpack.c.l.b16 %v444
    %v805 = vunpack.c.h.b16 %v444
    %v806 = vunpack.c.l.b16 %v445
    %v807 = vunpack.c.h.b16 %v445
    %v808 = vunpack.c.l.b16 %v446
    %v809 = vunpack.c.h.b16 %v446
    %v810 = vunpack.c.l.b16 %v447
    %v811 = vunpack.c.h.b16 %v447
    %v812 = vunpack.c.l.b16 %v448
    %v813 = vunpack.c.h.b16 %v448
    %v814 = vunpack.c.l.b16 %v449
    %v815 = vunpack.c.h.b16 %v449
    %v816 = vunpack.c.l.b16 %v450
    %v817 = vunpack.c.h.b16 %v450
    %v818 = vunpack.c.l.b16 %v451
    %v819 = vunpack.c.h.b16 %v451
    %v820 = vunpack.c.l.b16 %v452
    %v821 = vunpack.c.h.b16 %v452
    %v822 = vunpack.c.l.b16 %v453
    %v823 = vunpack.c.h.b16 %v453
    %v824 = vunpack.c.l.b16 %v454
    %v825 = vunpack.c.h.b16 %v454
    %v826 = vunpack.c.l.b16 %v455
    %v827 = vunpack.c.h.b16 %v455
    %v828 = vunpack.c.l.b16 %v456
    %v829 = vunpack.c.h.b16 %v456
    %v830 = vunpack.c.l.b16 %v457
    %v831 = vunpack.c.h.b16 %v457
    %v832 = vunpack.c.l.b16 %v458
    %v833 = vunpack.c.h.b16 %v458
    %v834 = vunpack.c.l.b16 %v459
    %v835 = vunpack.c.h.b16 %v459
    %v836 = vunpack.c.l.b16 %v460
    %v837 = vunpack.c.h.b16 %v460
    %v838 = vunpack.c.l.b16 %v461
    %v839 = vunpack.c.h.b16 %v461
    %v840 = vunpack.c.l.b16 %v462
    %v841 = vunpack.c.h.b16 %v462
    %v842 = vunpack.c.l.b16 %v463
    %v843 = vunpack.c.h.b16 %v463
    %v844 = vunpack.c.l.b16 %v464
    %v845 = vunpack.c.h.b16 %v464
    %v846 = vunpack.c.l.b16 %v465
    %v847 = vunpack.c.h.b16 %v465
    %v848 = vunpack.c.l.b16 %v466
    %v849 = vunpack.c.h.b16 %v466
    %v850 = vunpack.c.l.b16 %v467
    %v851 = vunpack.c.h.b16 %v467
    %v852 = vunpack.c.l.b16 %v468
    %v853 = vunpack.c.h.b16 %v468
    %v854 = vunpack.c.l.b16 %v469
    %v855 = vunpack.c.h.b16 %v469
    %v856 = vunpack.c.l.b16 %v470
    %v857 = vunpack.c.h.b16 %v470
    %v858 = vunpack.c.l.b16 %v471
    %v859 = vunpack.c.h.b16 %v471
    %v860 = vunpack.c.l.b16 %v472
    %v861 = vunpack.c.h.b16 %v472
    %v862 = vunpack.c.l.b16 %v473
    %v863 = vunpack.c.h.b16 %v473
    %v864 = vunpack.c.l.b16 %v474
    %v865 = vunpack.c.h.b16 %v474
    %v866 = vunpack.c.l.b16 %v475
    %v867 = vunpack.c.h.b16 %v475
    %v868 = vunpack.c.l.b16 %v476
    %v869 = vunpack.c.h.b16 %v476
    %v870 = vunpack.c.l.b16 %v477
    %v871 = vunpack.c.h.b16 %v477
    %v872 = vunpack.c.l.b16 %v478
    %v873 = vunpack.c.h.b16 %v478
    %v874 = vunpack.c.l.b16 %v479
    %v875 = vunpack.c.h.b16 %v479
    %v876 = vpack.c.b16 %v622, %v620
    %v877 = vpack.c.b16 %v623, %v621
    %v878 = vpack.c.b16 %v626, %v624
    %v879 = vpack.c.b16 %v627, %v625
    %v880 = vpack.c.b16 %v630, %v628
    %v881 = vpack.c.b16 %v631, %v629
    %v882 = vpack.c.b16 %v634, %v632
    %v883 = vpack.c.b16 %v635, %v633
    %v884 = vpack.c.b16 %v638, %v636
    %v885 = vpack.c.b16 %v639, %v637
    %v886 = vpack.c.b16 %v642, %v640
    %v887 = vpack.c.b16 %v643, %v641
    %v888 = vpack.c.b16 %v646, %v644
    %v889 = vpack.c.b16 %v647, %v645
    %v890 = vpack.c.b16 %v650, %v648
    %v891 = vpack.c.b16 %v651, %v649
    %v892 = vpack.c.b16 %v654, %v652
    %v893 = vpack.c.b16 %v655, %v653
    %v894 = vpack.c.b16 %v658, %v656
    %v895 = vpack.c.b16 %v659, %v657
    %v896 = vpack.c.b16 %v662, %v660
    %v897 = vpack.c.b16 %v663, %v661
    %v898 = vpack.c.b16 %v666, %v664
    %v899 = vpack.c.b16 %v667, %v665
    %v900 = vpack.c.b16 %v670, %v668
    %v901 = vpack.c.b16 %v671, %v669
    %v902 = vpack.c.b16 %v674, %v672
    %v903 = vpack.c.b16 %v675, %v673
    %v904 = vpack.c.b16 %v678, %v676
    %v905 = vpack.c.b16 %v679, %v677
    %v906 = vpack.c.b16 %v682, %v680
    %v907 = vpack.c.b16 %v683, %v681
    %v908 = vpack.c.b16 %v686, %v684
    %v909 = vpack.c.b16 %v687, %v685
    %v910 = vpack.c.b16 %v690, %v688
    %v911 = vpack.c.b16 %v691, %v689
    %v912 = vpack.c.b16 %v694, %v692
    %v913 = vpack.c.b16 %v695, %v693
    %v914 = vpack.c.b16 %v698, %v696
    %v915 = vpack.c.b16 %v699, %v697
    %v916 = vpack.c.b16 %v702, %v700
    %v917 = vpack.c.b16 %v703, %v701
    %v918 = vpack.c.b16 %v706, %v704
    %v919 = vpack.c.b16 %v707, %v705
    %v920 = vpack.c.b16 %v710, %v708
    %v921 = vpack.c.b16 %v711, %v709
    %v922 = vpack.c.b16 %v714, %v712
    %v923 = vpack.c.b16 %v715, %v713
    %v924 = vpack.c.b16 %v718, %v716
    %v925 = vpack.c.b16 %v719, %v717
    %v926 = vpack.c.b16 %v722, %v720
    %v927 = vpack.c.b16 %v723, %v721
    %v928 = vpack.c.b16 %v726, %v724
    %v929 = vpack.c.b16 %v727, %v725
    %v930 = vpack.c.b16 %v730, %v728
    %v931 = vpack.c.b16 %v731, %v729
    %v932 = vpack.c.b16 %v734, %v732
    %v933 = vpack.c.b16 %v735, %v733
    %v934 = vpack.c.b16 %v738, %v736
    %v935 = vpack.c.b16 %v739, %v737
    %v936 = vpack.c.b16 %v742, %v740
    %v937 = vpack.c.b16 %v743, %v741
    %v938 = vpack.c.b16 %v746, %v744
    %v939 = vpack.c.b16 %v747, %v745
    %v940 = vpack.c.b16 %v750, %v748
    %v941 = vpack.c.b16 %v751, %v749
    %v942 = vpack.c.b16 %v754, %v752
    %v943 = vpack.c.b16 %v755, %v753
    %v944 = vpack.c.b16 %v758, %v756
    %v945 = vpack.c.b16 %v759, %v757
    %v946 = vpack.c.b16 %v762, %v760
    %v947 = vpack.c.b16 %v763, %v761
    %v948 = vpack.c.b16 %v766, %v764
    %v949 = vpack.c.b16 %v767, %v765
    %v950 = vpack.c.b16 %v770, %v768
    %v951 = vpack.c.b16 %v771, %v769
    %v952 = vpack.c.b16 %v774, %v772
    %v953 = vpack.c.b16 %v775, %v773
    %v954 = vpack.c.b16 %v778, %v776
    %v955 = vpack.c.b16 %v779, %v777
    %v956 = vpack.c.b16 %v782, %v780
    %v957 = vpack.c.b16 %v783, %v781
    %v958 = vpack.c.b16 %v786, %v784
    %v959 = vpack.c.b16 %v787, %v785
    %v960 = vpack.c.b16 %v790, %v788
    %v961 = vpack.c.b16 %v791, %v789
    %v962 = vpack.c.b16 %v794, %v792
    %v963 = vpack.c.b16 %v795, %v793
    %v964 = vpack.c.b16 %v798, %v796
    %v965 = vpack.c.b16 %v799, %v797
    %v966 = vpack.c.b16 %v802, %v800
    %v967 = vpack.c.b16 %v803, %v801
    %v968 = vpack.c.b16 %v806, %v804
    %v969 = vpack.c.b16 %v807, %v805
    %v970 = vpack.c.b16 %v810, %v808
    %v971 = vpack.c.b16 %v811, %v809
    %v972 = vpack.c.b16 %v814, %v812
    %v973 = vpack.c.b16 %v815, %v813
    %v974 = vpack.c.b16 %v818, %v816
    %v975 = vpack.c.b16 %v819, %v817
    %v976 = vpack.c.b16 %v822, %v820
    %v977 = vpack.c.b16 %v823, %v821
    %v978 = vpack.c.b16 %v826, %v824
    %v979 = vpack.c.b16 %v827, %v825
    %v980 = vpack.c.b16 %v830, %v828
    %v981 = vpack.c.b16 %v831, %v829
    %v982 = vpack.c.b16 %v834, %v832
    %v983 = vpack.c.b16 %v835, %v833
    %v984 = vpack.c.b16 %v838, %v836
    %v985 = vpack.c.b16 %v839, %v837
    %v986 = vpack.c.b16 %v842, %v840
    %v987 = vpack.c.b16 %v843, %v841
    %v988 = vpack.c.b16 %v846, %v844
    %v989 = vpack.c.b16 %v847, %v845
    %v990 = vpack.c.b16 %v850, %v848
    %v991 = vpack.c.b16 %v851, %v849
    %v992 = vpack.c.b16 %v854, %v852
    %v993 = vpack.c.b16 %v855, %v853
    %v994 = vpack.c.b16 %v858, %v856
    %v995 = vpack.c.b16 %v859, %v857
    %v996 = vpack.c.b16 %v862, %v860
    %v997 = vpack.c.b16 %v863, %v861
    %v998 = vpack.c.b16 %v866, %v864
    %v999 = vpack.c.b16 %v867, %v865
    %v1000 = vpack.c.b16 %v870, %v868
    %v1001 = vpack.c.b16 %v871, %v869
    %v1002 = vpack.c.b16 %v874, %v872
    %v1003 = vpack.c.b16 %v875, %v873
    %1132 = vmatprep.subr.bf16.mxu0 %v877
    %1133 = vmatpush1.bf16.msra.mxu0 %v876
    %1134 = vmatprep.subr.bf16.mxu0 %v879
    %1135 = vmatpush1.bf16.msra.mxu0 %v878
    %1136 = vmatprep.subr.bf16.mxu0 %v881
    %1137 = vmatpush1.bf16.msra.mxu0 %v880
    %1138 = vmatprep.subr.bf16.mxu0 %v883
    %1139 = vmatpush1.bf16.msra.mxu0 %v882
    %1140 = vmatprep.subr.bf16.mxu0 %v885
    %1141 = vmatpush1.bf16.msra.mxu0 %v884
    %1142 = vmatprep.subr.bf16.mxu0 %v887
    %1143 = vmatpush1.bf16.msra.mxu0 %v886
    %1144 = vmatprep.subr.bf16.mxu0 %v889
    %1145 = vmatpush1.bf16.msra.mxu0 %v888
    %1146 = vmatprep.subr.bf16.mxu0 %v891
    %1147 = vmatpush1.bf16.msra.mxu0 %v890
    %1148 = vmatprep.subr.bf16.mxu0 %v893
    %1149 = vmatpush1.bf16.msra.mxu0 %v892
    %1150 = vmatprep.subr.bf16.mxu0 %v895
    %1151 = vmatpush1.bf16.msra.mxu0 %v894
    %1152 = vmatprep.subr.bf16.mxu0 %v897
    %1153 = vmatpush1.bf16.msra.mxu0 %v896
    %1154 = vmatprep.subr.bf16.mxu0 %v899
    %1155 = vmatpush1.bf16.msra.mxu0 %v898
    %1156 = vmatprep.subr.bf16.mxu0 %v901
    %1157 = vmatpush1.bf16.msra.mxu0 %v900
    %1158 = vmatprep.subr.bf16.mxu0 %v903
    %1159 = vmatpush1.bf16.msra.mxu0 %v902
    %1160 = vmatprep.subr.bf16.mxu0 %v905
    %1161 = vmatpush1.bf16.msra.mxu0 %v904
    %1162 = vmatprep.subr.bf16.mxu0 %v907
    %1163 = vmatpush1.bf16.msra.mxu0 %v906
    %1164 = vmatprep.mubr.bf16.mxu0 %v345
    %1165 = vmatmul.mubr.bf16.gmra.mrb[0].mxu0 %v344
    %v1166 = vpop.f32.mrb[0].mxu0
    %v1167 = vadd.f32 %v485, %v1166
    %v1168 = vpop.f32.mrb[0].mxu0
    %v1169 = vadd.f32 %v489, %v1168
    %v1170 = vpop.f32.mrb[0].mxu0
    %v1171 = vpop.f32.mrb[0].mxu0
    %1172 = vdwg.mxu0
    %1173 = vmatprep.subr.bf16.mxu0 %v909
    %1174 = vmatpush1.bf16.msra.mxu0 %v908
    %1175 = vmatprep.subr.bf16.mxu0 %v911
    %1176 = vmatpush1.bf16.msra.mxu0 %v910
    %1177 = vmatprep.subr.bf16.mxu0 %v913
    %1178 = vmatpush1.bf16.msra.mxu0 %v912
    %1179 = vmatprep.subr.bf16.mxu0 %v915
    %1180 = vmatpush1.bf16.msra.mxu0 %v914
    %1181 = vmatprep.subr.bf16.mxu0 %v917
    %1182 = vmatpush1.bf16.msra.mxu0 %v916
    %1183 = vmatprep.subr.bf16.mxu0 %v919
    %1184 = vmatpush1.bf16.msra.mxu0 %v918
    %1185 = vmatprep.subr.bf16.mxu0 %v921
    %1186 = vmatpush1.bf16.msra.mxu0 %v920
    %1187 = vmatprep.subr.bf16.mxu0 %v923
    %1188 = vmatpush1.bf16.msra.mxu0 %v922
    %1189 = vmatprep.subr.bf16.mxu0 %v925
    %1190 = vmatpush1.bf16.msra.mxu0 %v924
    %1191 = vmatprep.subr.bf16.mxu0 %v927
    %1192 = vmatpush1.bf16.msra.mxu0 %v926
    %1193 = vmatprep.subr.bf16.mxu0 %v929
    %1194 = vmatpush1.bf16.msra.mxu0 %v928
    %1195 = vmatprep.subr.bf16.mxu0 %v931
    %1196 = vmatpush1.bf16.msra.mxu0 %v930
    %1197 = vmatprep.subr.bf16.mxu0 %v933
    %1198 = vmatpush1.bf16.msra.mxu0 %v932
    %1199 = vmatprep.subr.bf16.mxu0 %v935
    %1200 = vmatpush1.bf16.msra.mxu0 %v934
    %1201 = vmatprep.subr.bf16.mxu0 %v937
    %1202 = vmatpush1.bf16.msra.mxu0 %v936
    %1203 = vmatprep.subr.bf16.mxu0 %v939
    %1204 = vmatpush1.bf16.msra.mxu0 %v938
    %1205 = vmatprep.mubr.bf16.mxu0 %v347
    %1206 = vmatmul.mubr.bf16.gmra.mrb[0].mxu0 %v346
    %v1207 = vpop.f32.mrb[0].mxu0
    %v1208 = vadd.f32 %v1167, %v1207
    %v1209 = vpop.f32.mrb[0].mxu0
    %v1210 = vadd.f32 %v1169, %v1209
    %v1211 = vpop.f32.mrb[0].mxu0
    %v1212 = vpop.f32.mrb[0].mxu0
    %1213 = vdwg.mxu0
    %1214 = vmatprep.subr.bf16.mxu0 %v941
    %1215 = vmatpush1.bf16.msra.mxu0 %v940
    %1216 = vmatprep.subr.bf16.mxu0 %v943
    %1217 = vmatpush1.bf16.msra.mxu0 %v942
    %1218 = vmatprep.subr.bf16.mxu0 %v945
    %1219 = vmatpush1.bf16.msra.mxu0 %v944
    %1220 = vmatprep.subr.bf16.mxu0 %v947
    %1221 = vmatpush1.bf16.msra.mxu0 %v946
    %1222 = vmatprep.subr.bf16.mxu0 %v949
    %1223 = vmatpush1.bf16.msra.mxu0 %v948
    %1224 = vmatprep.subr.bf16.mxu0 %v951
    %1225 = vmatpush1.bf16.msra.mxu0 %v950
    %1226 = vmatprep.subr.bf16.mxu0 %v953
    %1227 = vmatpush1.bf16.msra.mxu0 %v952
    %1228 = vmatprep.subr.bf16.mxu0 %v955
    %1229 = vmatpush1.bf16.msra.mxu0 %v954
    %1230 = vmatprep.subr.bf16.mxu0 %v957
    %1231 = vmatpush1.bf16.msra.mxu0 %v956
    %1232 = vmatprep.subr.bf16.mxu0 %v959
    %1233 = vmatpush1.bf16.msra.mxu0 %v958
    %1234 = vmatprep.subr.bf16.mxu0 %v961
    %1235 = vmatpush1.bf16.msra.mxu0 %v960
    %1236 = vmatprep.subr.bf16.mxu0 %v963
    %1237 = vmatpush1.bf16.msra.mxu0 %v962
    %1238 = vmatprep.subr.bf16.mxu0 %v965
    %1239 = vmatpush1.bf16.msra.mxu0 %v964
    %1240 = vmatprep.subr.bf16.mxu0 %v967
    %1241 = vmatpush1.bf16.msra.mxu0 %v966
    %1242 = vmatprep.subr.bf16.mxu0 %v969
    %1243 = vmatpush1.bf16.msra.mxu0 %v968
    %1244 = vmatprep.subr.bf16.mxu0 %v971
    %1245 = vmatpush1.bf16.msra.mxu0 %v970
    %1246 = vmatprep.mubr.bf16.mxu0 %v349
    %1247 = vmatmul.mubr.bf16.gmra.mrb[0].mxu0 %v348
    %v1248 = vpop.f32.mrb[0].mxu0
    %v1249 = vadd.f32 %v1208, %v1248
    %v1250 = vpop.f32.mrb[0].mxu0
    %v1251 = vadd.f32 %v1210, %v1250
    %v1252 = vpop.f32.mrb[0].mxu0
    %v1253 = vpop.f32.mrb[0].mxu0
    %1254 = vdwg.mxu0
    %1255 = vmatprep.subr.bf16.mxu0 %v973
    %1256 = vmatpush1.bf16.msra.mxu0 %v972
    %1257 = vmatprep.subr.bf16.mxu0 %v975
    %1258 = vmatpush1.bf16.msra.mxu0 %v974
    %1259 = vmatprep.subr.bf16.mxu0 %v977
    %1260 = vmatpush1.bf16.msra.mxu0 %v976
    %1261 = vmatprep.subr.bf16.mxu0 %v979
    %1262 = vmatpush1.bf16.msra.mxu0 %v978
    %1263 = vmatprep.subr.bf16.mxu0 %v981
    %1264 = vmatpush1.bf16.msra.mxu0 %v980
    %1265 = vmatprep.subr.bf16.mxu0 %v983
    %1266 = vmatpush1.bf16.msra.mxu0 %v982
    %1267 = vmatprep.subr.bf16.mxu0 %v985
    %1268 = vmatpush1.bf16.msra.mxu0 %v984
    %1269 = vmatprep.subr.bf16.mxu0 %v987
    %1270 = vmatpush1.bf16.msra.mxu0 %v986
    %1271 = vmatprep.subr.bf16.mxu0 %v989
    %1272 = vmatpush1.bf16.msra.mxu0 %v988
    %1273 = vmatprep.subr.bf16.mxu0 %v991
    %1274 = vmatpush1.bf16.msra.mxu0 %v990
    %1275 = vmatprep.subr.bf16.mxu0 %v993
    %1276 = vmatpush1.bf16.msra.mxu0 %v992
    %1277 = vmatprep.subr.bf16.mxu0 %v995
    %1278 = vmatpush1.bf16.msra.mxu0 %v994
    %1279 = vmatprep.subr.bf16.mxu0 %v997
    %1280 = vmatpush1.bf16.msra.mxu0 %v996
    %1281 = vmatprep.subr.bf16.mxu0 %v999
    %1282 = vmatpush1.bf16.msra.mxu0 %v998
    %1283 = vmatprep.subr.bf16.mxu0 %v1001
    %1284 = vmatpush1.bf16.msra.mxu0 %v1000
    %1285 = vmatprep.subr.bf16.mxu0 %v1003
    %1286 = vmatpush1.bf16.msra.mxu0 %v1002
    %1287 = vmatprep.mubr.bf16.mxu0 %v351
    %1288 = vmatmul.mubr.bf16.gmra.mrb[0].mxu0 %v350
    %v1289 = vpop.f32.mrb[0].mxu0
    %v1290 = vadd.f32 %v1249, %v1289
    %v1291 = vpop.f32.mrb[0].mxu0
    %v1292 = vadd.f32 %v1251, %v1291
    %v1293 = vpop.f32.mrb[0].mxu0
    %v1294 = vpop.f32.mrb[0].mxu0
    %1295 = vdwg.mxu0
    %v1296 = vmul.f32 %v1290, 0.01
    %v1297 = vmul.f32 %v1292, 0.01
    %v1298 = vmax.f32 %v1290, %v1296
    %v1299 = vmax.f32 %v1292, %v1297
    %v1300 = vpack.c.bf16 %v1298, %v1298
    %v1301 = vpack.c.bf16 %v1299, %v1299
    %v1302 = vld [vmem:[#allocation6] sm:$0xff]
    %v1303 = vld [vmem:[#allocation6 + $0x8] sm:$0xff]
    %v1304 = vld [vmem:[#allocation6 + $0x10] sm:$0xff]
    %v1305 = vld [vmem:[#allocation6 + $0x18] sm:$0xff]
    %v1306 = vld [vmem:[#allocation6 + $0x20] sm:$0xff]
    %v1307 = vld [vmem:[#allocation6 + $0x28] sm:$0xff]
    %v1308 = vld [vmem:[#allocation6 + $0x30] sm:$0xff]
    %v1309 = vld [vmem:[#allocation6 + $0x38] sm:$0xff]
    %v1310 = vld [vmem:[#allocation6 + $0x40] sm:$0xff]
    %v1311 = vld [vmem:[#allocation6 + $0x48] sm:$0xff]
    %v1312 = vld [vmem:[#allocation6 + $0x50] sm:$0xff]
    %v1313 = vld [vmem:[#allocation6 + $0x58] sm:$0xff]
    %v1314 = vld [vmem:[#allocation6 + $0x60] sm:$0xff]
    %v1315 = vld [vmem:[#allocation6 + $0x68] sm:$0xff]
    %v1316 = vld [vmem:[#allocation6 + $0x70] sm:$0xff]
    %v1317 = vld [vmem:[#allocation6 + $0x78] sm:$0xff]
    %v1318 = vld [vmem:[#allocation6 + $0x80] sm:$0xff]
    %v1319 = vld [vmem:[#allocation6 + $0x88] sm:$0xff]
    %v1320 = vld [vmem:[#allocation6 + $0x90] sm:$0xff]
    %v1321 = vld [vmem:[#allocation6 + $0x98] sm:$0xff]
    %v1322 = vld [vmem:[#allocation6 + $0xa0] sm:$0xff]
    %v1323 = vld [vmem:[#allocation6 + $0xa8] sm:$0xff]
    %v1324 = vld [vmem:[#allocation6 + $0xb0] sm:$0xff]
    %v1325 = vld [vmem:[#allocation6 + $0xb8] sm:$0xff]
    %v1326 = vld [vmem:[#allocation6 + $0xc0] sm:$0xff]
    %v1327 = vld [vmem:[#allocation6 + $0xc8] sm:$0xff]
    %v1328 = vld [vmem:[#allocation6 + $0xd0] sm:$0xff]
    %v1329 = vld [vmem:[#allocation6 + $0xd8] sm:$0xff]
    %v1330 = vld [vmem:[#allocation6 + $0xe0] sm:$0xff]
    %v1331 = vld [vmem:[#allocation6 + $0xe8] sm:$0xff]
    %v1332 = vld [vmem:[#allocation6 + $0xf0] sm:$0xff]
    %v1333 = vld [vmem:[#allocation6 + $0xf8] sm:$0xff]
    %v1334 = vld [vmem:[#allocation6 + $0x100] sm:$0xff]
    %v1335 = vld [vmem:[#allocation6 + $0x108] sm:$0xff]
    %v1336 = vld [vmem:[#allocation6 + $0x110] sm:$0xff]
    %v1337 = vld [vmem:[#allocation6 + $0x118] sm:$0xff]
    %v1338 = vld [vmem:[#allocation6 + $0x120] sm:$0xff]
    %v1339 = vld [vmem:[#allocation6 + $0x128] sm:$0xff]
    %v1340 = vld [vmem:[#allocation6 + $0x130] sm:$0xff]
    %v1341 = vld [vmem:[#allocation6 + $0x138] sm:$0xff]
    %v1342 = vld [vmem:[#allocation6 + $0x140] sm:$0xff]
    %v1343 = vld [vmem:[#allocation6 + $0x148] sm:$0xff]
    %v1344 = vld [vmem:[#allocation6 + $0x150] sm:$0xff]
    %v1345 = vld [vmem:[#allocation6 + $0x158] sm:$0xff]
    %v1346 = vld [vmem:[#allocation6 + $0x160] sm:$0xff]
    %v1347 = vld [vmem:[#allocation6 + $0x168] sm:$0xff]
    %v1348 = vld [vmem:[#allocation6 + $0x170] sm:$0xff]
    %v1349 = vld [vmem:[#allocation6 + $0x178] sm:$0xff]
    %v1350 = vld [vmem:[#allocation6 + $0x180] sm:$0xff]
    %v1351 = vld [vmem:[#allocation6 + $0x188] sm:$0xff]
    %v1352 = vld [vmem:[#allocation6 + $0x190] sm:$0xff]
    %v1353 = vld [vmem:[#allocation6 + $0x198] sm:$0xff]
    %v1354 = vld [vmem:[#allocation6 + $0x1a0] sm:$0xff]
    %v1355 = vld [vmem:[#allocation6 + $0x1a8] sm:$0xff]
    %v1356 = vld [vmem:[#allocation6 + $0x1b0] sm:$0xff]
    %v1357 = vld [vmem:[#allocation6 + $0x1b8] sm:$0xff]
    %v1358 = vld [vmem:[#allocation6 + $0x1c0] sm:$0xff]
    %v1359 = vld [vmem:[#allocation6 + $0x1c8] sm:$0xff]
    %v1360 = vld [vmem:[#allocation6 + $0x1d0] sm:$0xff]
    %v1361 = vld [vmem:[#allocation6 + $0x1d8] sm:$0xff]
    %v1362 = vld [vmem:[#allocation6 + $0x1e0] sm:$0xff]
    %v1363 = vld [vmem:[#allocation6 + $0x1e8] sm:$0xff]
    %v1364 = vld [vmem:[#allocation6 + $0x1f0] sm:$0xff]
    %v1365 = vld [vmem:[#allocation6 + $0x1f8] sm:$0xff]
    %v1366 = vld [vmem:[%s6] sm:$0xf]
    %v1368 = vlaneseq
    %v1369 = vshrl.u32 %v1368, 7
    %v1370 = vsub.s32 0, %v1369
    %v1371 = vrot.slane %v1366, %v1370
    %v1372 = vlaneseq
    %v1373 = vshrl.u32 %v1372, 7
    %v1374 = vsub.s32 1, %v1373
    %v1375 = vrot.slane %v1366, %v1374
    %v1376 = vlaneseq
    %v1377 = vshrl.u32 %v1376, 7
    %v1378 = vsub.s32 2, %v1377
    %v1379 = vrot.slane %v1366, %v1378
    %v1380 = vlaneseq
    %v1381 = vshrl.u32 %v1380, 7
    %v1382 = vsub.s32 3, %v1381
    %v1383 = vrot.slane %v1366, %v1382
    %v1452 = vunpack.c.l.b16 %v1302
    %v1453 = vunpack.c.h.b16 %v1302
    %v1454 = vunpack.c.l.b16 %v1303
    %v1455 = vunpack.c.h.b16 %v1303
    %v1456 = vunpack.c.l.b16 %v1304
    %v1457 = vunpack.c.h.b16 %v1304
    %v1458 = vunpack.c.l.b16 %v1305
    %v1459 = vunpack.c.h.b16 %v1305
    %v1460 = vunpack.c.l.b16 %v1306
    %v1461 = vunpack.c.h.b16 %v1306
    %v1462 = vunpack.c.l.b16 %v1307
    %v1463 = vunpack.c.h.b16 %v1307
    %v1464 = vunpack.c.l.b16 %v1308
    %v1465 = vunpack.c.h.b16 %v1308
    %v1466 = vunpack.c.l.b16 %v1309
    %v1467 = vunpack.c.h.b16 %v1309
    %v1468 = vunpack.c.l.b16 %v1310
    %v1469 = vunpack.c.h.b16 %v1310
    %v1470 = vunpack.c.l.b16 %v1311
    %v1471 = vunpack.c.h.b16 %v1311
    %v1472 = vunpack.c.l.b16 %v1312
    %v1473 = vunpack.c.h.b16 %v1312
    %v1474 = vunpack.c.l.b16 %v1313
    %v1475 = vunpack.c.h.b16 %v1313
    %v1476 = vunpack.c.l.b16 %v1314
    %v1477 = vunpack.c.h.b16 %v1314
    %v1478 = vunpack.c.l.b16 %v1315
    %v1479 = vunpack.c.h.b16 %v1315
    %v1480 = vunpack.c.l.b16 %v1316
    %v1481 = vunpack.c.h.b16 %v1316
    %v1482 = vunpack.c.l.b16 %v1317
    %v1483 = vunpack.c.h.b16 %v1317
    %v1484 = vunpack.c.l.b16 %v1318
    %v1485 = vunpack.c.h.b16 %v1318
    %v1486 = vunpack.c.l.b16 %v1319
    %v1487 = vunpack.c.h.b16 %v1319
    %v1488 = vunpack.c.l.b16 %v1320
    %v1489 = vunpack.c.h.b16 %v1320
    %v1490 = vunpack.c.l.b16 %v1321
    %v1491 = vunpack.c.h.b16 %v1321
    %v1492 = vunpack.c.l.b16 %v1322
    %v1493 = vunpack.c.h.b16 %v1322
    %v1494 = vunpack.c.l.b16 %v1323
    %v1495 = vunpack.c.h.b16 %v1323
    %v1496 = vunpack.c.l.b16 %v1324
    %v1497 = vunpack.c.h.b16 %v1324
    %v1498 = vunpack.c.l.b16 %v1325
    %v1499 = vunpack.c.h.b16 %v1325
    %v1500 = vunpack.c.l.b16 %v1326
    %v1501 = vunpack.c.h.b16 %v1326
    %v1502 = vunpack.c.l.b16 %v1327
    %v1503 = vunpack.c.h.b16 %v1327
    %v1504 = vunpack.c.l.b16 %v1328
    %v1505 = vunpack.c.h.b16 %v1328
    %v1506 = vunpack.c.l.b16 %v1329
    %v1507 = vunpack.c.h.b16 %v1329
    %v1508 = vunpack.c.l.b16 %v1330
    %v1509 = vunpack.c.h.b16 %v1330
    %v1510 = vunpack.c.l.b16 %v1331
    %v1511 = vunpack.c.h.b16 %v1331
    %v1512 = vunpack.c.l.b16 %v1332
    %v1513 = vunpack.c.h.b16 %v1332
    %v1514 = vunpack.c.l.b16 %v1333
    %v1515 = vunpack.c.h.b16 %v1333
    %v1516 = vunpack.c.l.b16 %v1334
    %v1517 = vunpack.c.h.b16 %v1334
    %v1518 = vunpack.c.l.b16 %v1335
    %v1519 = vunpack.c.h.b16 %v1335
    %v1520 = vunpack.c.l.b16 %v1336
    %v1521 = vunpack.c.h.b16 %v1336
    %v1522 = vunpack.c.l.b16 %v1337
    %v1523 = vunpack.c.h.b16 %v1337
    %v1524 = vunpack.c.l.b16 %v1338
    %v1525 = vunpack.c.h.b16 %v1338
    %v1526 = vunpack.c.l.b16 %v1339
    %v1527 = vunpack.c.h.b16 %v1339
    %v1528 = vunpack.c.l.b16 %v1340
    %v1529 = vunpack.c.h.b16 %v1340
    %v1530 = vunpack.c.l.b16 %v1341
    %v1531 = vunpack.c.h.b16 %v1341
    %v1532 = vunpack.c.l.b16 %v1342
    %v1533 = vunpack.c.h.b16 %v1342
    %v1534 = vunpack.c.l.b16 %v1343
    %v1535 = vunpack.c.h.b16 %v1343
    %v1536 = vunpack.c.l.b16 %v1344
    %v1537 = vunpack.c.h.b16 %v1344
    %v1538 = vunpack.c.l.b16 %v1345
    %v1539 = vunpack.c.h.b16 %v1345
    %v1540 = vunpack.c.l.b16 %v1346
    %v1541 = vunpack.c.h.b16 %v1346
    %v1542 = vunpack.c.l.b16 %v1347
    %v1543 = vunpack.c.h.b16 %v1347
    %v1544 = vunpack.c.l.b16 %v1348
    %v1545 = vunpack.c.h.b16 %v1348
    %v1546 = vunpack.c.l.b16 %v1349
    %v1547 = vunpack.c.h.b16 %v1349
    %v1548 = vunpack.c.l.b16 %v1350
    %v1549 = vunpack.c.h.b16 %v1350
    %v1550 = vunpack.c.l.b16 %v1351
    %v1551 = vunpack.c.h.b16 %v1351
    %v1552 = vunpack.c.l.b16 %v1352
    %v1553 = vunpack.c.h.b16 %v1352
    %v1554 = vunpack.c.l.b16 %v1353
    %v1555 = vunpack.c.h.b16 %v1353
    %v1556 = vunpack.c.l.b16 %v1354
    %v1557 = vunpack.c.h.b16 %v1354
    %v1558 = vunpack.c.l.b16 %v1355
    %v1559 = vunpack.c.h.b16 %v1355
    %v1560 = vunpack.c.l.b16 %v1356
    %v1561 = vunpack.c.h.b16 %v1356
    %v1562 = vunpack.c.l.b16 %v1357
    %v1563 = vunpack.c.h.b16 %v1357
    %v1564 = vunpack.c.l.b16 %v1358
    %v1565 = vunpack.c.h.b16 %v1358
    %v1566 = vunpack.c.l.b16 %v1359
    %v1567 = vunpack.c.h.b16 %v1359
    %v1568 = vunpack.c.l.b16 %v1360
    %v1569 = vunpack.c.h.b16 %v1360
    %v1570 = vunpack.c.l.b16 %v1361
    %v1571 = vunpack.c.h.b16 %v1361
    %v1572 = vunpack.c.l.b16 %v1362
    %v1573 = vunpack.c.h.b16 %v1362
    %v1574 = vunpack.c.l.b16 %v1363
    %v1575 = vunpack.c.h.b16 %v1363
    %v1576 = vunpack.c.l.b16 %v1364
    %v1577 = vunpack.c.h.b16 %v1364
    %v1578 = vunpack.c.l.b16 %v1365
    %v1579 = vunpack.c.h.b16 %v1365
    %v1580 = vpack.c.b16 %v1456, %v1452
    %v1581 = vpack.c.b16 %v1457, %v1453
    %v1582 = vpack.c.b16 %v1458, %v1454
    %v1583 = vpack.c.b16 %v1459, %v1455
    %v1584 = vpack.c.b16 %v1464, %v1460
    %v1585 = vpack.c.b16 %v1465, %v1461
    %v1586 = vpack.c.b16 %v1466, %v1462
    %v1587 = vpack.c.b16 %v1467, %v1463
    %v1588 = vpack.c.b16 %v1472, %v1468
    %v1589 = vpack.c.b16 %v1473, %v1469
    %v1590 = vpack.c.b16 %v1474, %v1470
    %v1591 = vpack.c.b16 %v1475, %v1471
    %v1592 = vpack.c.b16 %v1480, %v1476
    %v1593 = vpack.c.b16 %v1481, %v1477
    %v1594 = vpack.c.b16 %v1482, %v1478
    %v1595 = vpack.c.b16 %v1483, %v1479
    %v1596 = vpack.c.b16 %v1488, %v1484
    %v1597 = vpack.c.b16 %v1489, %v1485
    %v1598 = vpack.c.b16 %v1490, %v1486
    %v1599 = vpack.c.b16 %v1491, %v1487
    %v1600 = vpack.c.b16 %v1496, %v1492
    %v1601 = vpack.c.b16 %v1497, %v1493
    %v1602 = vpack.c.b16 %v1498, %v1494
    %v1603 = vpack.c.b16 %v1499, %v1495
    %v1604 = vpack.c.b16 %v1504, %v1500
    %v1605 = vpack.c.b16 %v1505, %v1501
    %v1606 = vpack.c.b16 %v1506, %v1502
    %v1607 = vpack.c.b16 %v1507, %v1503
    %v1608 = vpack.c.b16 %v1512, %v1508
    %v1609 = vpack.c.b16 %v1513, %v1509
    %v1610 = vpack.c.b16 %v1514, %v1510
    %v1611 = vpack.c.b16 %v1515, %v1511
    %v1612 = vpack.c.b16 %v1520, %v1516
    %v1613 = vpack.c.b16 %v1521, %v1517
    %v1614 = vpack.c.b16 %v1522, %v1518
    %v1615 = vpack.c.b16 %v1523, %v1519
    %v1616 = vpack.c.b16 %v1528, %v1524
    %v1617 = vpack.c.b16 %v1529, %v1525
    %v1618 = vpack.c.b16 %v1530, %v1526
    %v1619 = vpack.c.b16 %v1531, %v1527
    %v1620 = vpack.c.b16 %v1536, %v1532
    %v1621 = vpack.c.b16 %v1537, %v1533
    %v1622 = vpack.c.b16 %v1538, %v1534
    %v1623 = vpack.c.b16 %v1539, %v1535
    %v1624 = vpack.c.b16 %v1544, %v1540
    %v1625 = vpack.c.b16 %v1545, %v1541
    %v1626 = vpack.c.b16 %v1546, %v1542
    %v1627 = vpack.c.b16 %v1547, %v1543
    %v1628 = vpack.c.b16 %v1552, %v1548
    %v1629 = vpack.c.b16 %v1553, %v1549
    %v1630 = vpack.c.b16 %v1554, %v1550
    %v1631 = vpack.c.b16 %v1555, %v1551
    %v1632 = vpack.c.b16 %v1560, %v1556
    %v1633 = vpack.c.b16 %v1561, %v1557
    %v1634 = vpack.c.b16 %v1562, %v1558
    %v1635 = vpack.c.b16 %v1563, %v1559
    %v1636 = vpack.c.b16 %v1568, %v1564
    %v1637 = vpack.c.b16 %v1569, %v1565
    %v1638 = vpack.c.b16 %v1570, %v1566
    %v1639 = vpack.c.b16 %v1571, %v1567
    %v1640 = vpack.c.b16 %v1576, %v1572
    %v1641 = vpack.c.b16 %v1577, %v1573
    %v1642 = vpack.c.b16 %v1578, %v1574
    %v1643 = vpack.c.b16 %v1579, %v1575
    %1708 = vmatprep.subr.bf16.mxu0 %v1581
    %1709 = vmatpush1.bf16.msra.mxu0 %v1580
    %1710 = vmatprep.subr.bf16.mxu0 %v1585
    %1711 = vmatpush1.bf16.msra.mxu0 %v1584
    %1712 = vmatprep.subr.bf16.mxu0 %v1589
    %1713 = vmatpush1.bf16.msra.mxu0 %v1588
    %1714 = vmatprep.subr.bf16.mxu0 %v1593
    %1715 = vmatpush1.bf16.msra.mxu0 %v1592
    %1716 = vmatprep.subr.bf16.mxu0 %v1597
    %1717 = vmatpush1.bf16.msra.mxu0 %v1596
    %1718 = vmatprep.subr.bf16.mxu0 %v1601
    %1719 = vmatpush1.bf16.msra.mxu0 %v1600
    %1720 = vmatprep.subr.bf16.mxu0 %v1605
    %1721 = vmatpush1.bf16.msra.mxu0 %v1604
    %1722 = vmatprep.subr.bf16.mxu0 %v1609
    %1723 = vmatpush1.bf16.msra.mxu0 %v1608
    %1724 = vmatprep.subr.bf16.mxu0 %v1613
    %1725 = vmatpush1.bf16.msra.mxu0 %v1612
    %1726 = vmatprep.subr.bf16.mxu0 %v1617
    %1727 = vmatpush1.bf16.msra.mxu0 %v1616
    %1728 = vmatprep.subr.bf16.mxu0 %v1621
    %1729 = vmatpush1.bf16.msra.mxu0 %v1620
    %1730 = vmatprep.subr.bf16.mxu0 %v1625
    %1731 = vmatpush1.bf16.msra.mxu0 %v1624
    %1732 = vmatprep.subr.bf16.mxu0 %v1629
    %1733 = vmatpush1.bf16.msra.mxu0 %v1628
    %1734 = vmatprep.subr.bf16.mxu0 %v1633
    %1735 = vmatpush1.bf16.msra.mxu0 %v1632
    %1736 = vmatprep.subr.bf16.mxu0 %v1637
    %1737 = vmatpush1.bf16.msra.mxu0 %v1636
    %1738 = vmatprep.subr.bf16.mxu0 %v1641
    %1739 = vmatpush1.bf16.msra.mxu0 %v1640
    %1740 = vmatprep.mubr.bf16.mxu0 %v1301
    %1741 = vmatmul.mubr.bf16.gmra.mrb[0].mxu0 %v1300
    %v1742 = vpop.f32.mrb[0].mxu0
    %v1743 = vadd.f32 %v1371, %v1742
    %v1744 = vpop.f32.mrb[0].mxu0
    %v1745 = vadd.f32 %v1375, %v1744
    %v1746 = vpop.f32.mrb[0].mxu0
    %v1747 = vpop.f32.mrb[0].mxu0
    %1748 = vdwg.mxu0
    %1749 = vmatprep.subr.bf16.mxu0 %v1583
    %1750 = vmatpush1.bf16.msra.mxu0 %v1582
    %1751 = vmatprep.subr.bf16.mxu0 %v1587
    %1752 = vmatpush1.bf16.msra.mxu0 %v1586
    %1753 = vmatprep.subr.bf16.mxu0 %v1591
    %1754 = vmatpush1.bf16.msra.mxu0 %v1590
    %1755 = vmatprep.subr.bf16.mxu0 %v1595
    %1756 = vmatpush1.bf16.msra.mxu0 %v1594
    %1757 = vmatprep.subr.bf16.mxu0 %v1599
    %1758 = vmatpush1.bf16.msra.mxu0 %v1598
    %1759 = vmatprep.subr.bf16.mxu0 %v1603
    %1760 = vmatpush1.bf16.msra.mxu0 %v1602
    %1761 = vmatprep.subr.bf16.mxu0 %v1607
    %1762 = vmatpush1.bf16.msra.mxu0 %v1606
    %1763 = vmatprep.subr.bf16.mxu0 %v1611
    %1764 = vmatpush1.bf16.msra.mxu0 %v1610
    %1765 = vmatprep.subr.bf16.mxu0 %v1615
    %1766 = vmatpush1.bf16.msra.mxu0 %v1614
    %1767 = vmatprep.subr.bf16.mxu0 %v1619
    %1768 = vmatpush1.bf16.msra.mxu0 %v1618
    %1769 = vmatprep.subr.bf16.mxu0 %v1623
    %1770 = vmatpush1.bf16.msra.mxu0 %v1622
    %1771 = vmatprep.subr.bf16.mxu0 %v1627
    %1772 = vmatpush1.bf16.msra.mxu0 %v1626
    %1773 = vmatprep.subr.bf16.mxu0 %v1631
    %1774 = vmatpush1.bf16.msra.mxu0 %v1630
    %1775 = vmatprep.subr.bf16.mxu0 %v1635
    %1776 = vmatpush1.bf16.msra.mxu0 %v1634
    %1777 = vmatprep.subr.bf16.mxu0 %v1639
    %1778 = vmatpush1.bf16.msra.mxu0 %v1638
    %1779 = vmatprep.subr.bf16.mxu0 %v1643
    %1780 = vmatpush1.bf16.msra.mxu0 %v1642
    %1781 = vmatprep.mubr.bf16.mxu0 %v1301
    %1782 = vmatmul.mubr.bf16.gmra.mrb[0].mxu0 %v1300
    %v1783 = vpop.f32.mrb[0].mxu0
    %v1784 = vadd.f32 %v1379, %v1783
    %v1785 = vpop.f32.mrb[0].mxu0
    %v1786 = vadd.f32 %v1383, %v1785
    %v1787 = vpop.f32.mrb[0].mxu0
    %v1788 = vpop.f32.mrb[0].mxu0
    %1789 = vdwg.mxu0
    %1790 = vst [vmem:[%s7] sm:$0xff] %v1743
    %1791 = vst [vmem:[%s7 + $0x8] sm:$0xff] %v1745
    %1792 = vst [vmem:[%s7 + $0x10] sm:$0xff] %v1784
    %1793 = vst [vmem:[%s7 + $0x18] sm:$0xff] %v1786
    // Predicated region
    $region42: #{decoder_forward.1} parent=1 // pred_check
      _
    $region43: #{decoder_forward.1} parent=1 // pred_check_branch
      %1795 = sbr.rel (0) target = $region45
    $region44: #{decoder_forward.1} parent=1 // pred_region
      _
    $region45: #{decoder_forward.1} parent=1 // pred_fallthru
      _
    // Predicated region
    $region46: #{decoder_forward.1} parent=1 // pred_check
      _
    $region47: #{decoder_forward.1} parent=1 // pred_check_branch
      %1797 = sbr.rel (0) target = $region49
    $region48: #{decoder_forward.1} parent=1 // pred_region
      _
    $region49: #{decoder_forward.1} parent=1 // pred_fallthru
      _
    %1798 = vsyncpa [#allocation3], 1
    %1799 = vsyncpa [#allocation5], 1

</llo_original>
